<compile_context>
chip_gen: v6e
topology: v6e:2x2x1
jax: 0.10.0
libtpu: 0.0.40
codegen_flags: <defaults>
</compile_context>

<pallas_src>
import functools

import jax
import jax.numpy as jnp
from jax.experimental import pallas as pl
from jax.experimental.pallas import tpu as pltpu


# ---------------------------------------------------------------------------
# Fused Residual kernel — TB batch elements per grid step.
# ---------------------------------------------------------------------------
def _residual_kernel(x_ref, band1_ref, b1_ref, band2_ref, b2_ref, o_ref,
                     pad1, pad2, *, H, W, C, D):
    """One fused relu -> conv1 -> relu -> conv2 -> relu -> add step.

    x_ref:     (TB, H, W*C)        lane-merged input block
    band*_ref: (3, W*Cin, W*D)     block-banded weight matrices (one per ky)
    b*_ref:    (1, W*D)            bias tiled along the width (lane) axis
    o_ref:     (TB, H, W*D)        lane-merged output block
    pad1/pad2: (TB, H+2, W*Cin)    VMEM scratch, zero rows only at the border
    """
    TB = o_ref.shape[0]
    WC = W * C
    WD = W * D

    x = x_ref[...]                                        # (TB, H, W*C) f32

    # relu(x) -> interior of pad1; zero only the top/bottom border rows
    # (the interior is fully rewritten, so no full-buffer zero fill).
    zrow_c = jnp.zeros((TB, 1, WC), jnp.float32)
    pad1[:, 0:1, :] = zrow_c
    pad1[:, H + 1:H + 2, :] = zrow_c
    pad1[:, 1:H + 1, :] = jnp.maximum(x, 0.0)

    def banded_conv_relu(pad_ref, band_ref, bias_row, Cin):
        # 3 banded MXU matmuls (K = W*Cin, N = W*D); width padding and the kx
        # taps are already folded into band_ref, so no per-tap relayouts.
        acc = jnp.zeros((TB * H, WD), jnp.float32)
        for ky in range(3):
            lhs = pad_ref[:, ky:ky + H, :].reshape(TB * H, W * Cin)
            acc = acc + jnp.dot(lhs, band_ref[ky],
                                preferred_element_type=jnp.float32)
        return jnp.maximum(acc + bias_row, 0.0)           # (TB*H, W*D)

    # relu(conv1(relu(x))) written directly into pad2's interior.
    h1 = banded_conv_relu(pad1, band1_ref, b1_ref[...], C)

    zrow_d = jnp.zeros((TB, 1, WD), jnp.float32)
    pad2[:, 0:1, :] = zrow_d
    pad2[:, H + 1:H + 2, :] = zrow_d
    pad2[:, 1:H + 1, :] = h1.reshape(TB, H, WD)

    # relu(conv2(...)) + residual skip-add, straight into the output block.
    h2 = banded_conv_relu(pad2, band2_ref, b2_ref[...], D)
    o_ref[...] = x + h2.reshape(TB, H, WD)


# ---------------------------------------------------------------------------
# Wrapper: weight packing + pallas_call.
# ---------------------------------------------------------------------------
def _build_bands(w_hwio, W):
    """Pack a (3, 3, Cin, Cout) HWIO conv kernel into 3 block-banded matrices.

    band[ky][w_in*Cin + c, w_out*Cout + d] = w[ky, kx, c, d] iff
    w_in == w_out + kx - 1 (in range), which encodes both the 3 kx taps and
    the implicit zero padding along the width dimension.
    """
    KH, KW, Cin, Cout = w_hwio.shape
    w = w_hwio.astype(jnp.float32)
    bands = []
    for ky in range(KH):
        band = jnp.zeros((W * Cin, W * Cout), jnp.float32)
        for kx in range(KW):
            sel = jnp.eye(W, W, 1 - kx, dtype=jnp.float32)   # shifted identity
            band = band + jnp.kron(sel, w[ky, kx])
        bands.append(band)
    return jnp.stack(bands, axis=0)                           # (3, W*Cin, W*Cout)


def residual_forward(params, x_nchw):
    """x_nchw: (N, C, H, W) f32. Returns (N, D, H, W) with D == depth."""
    N, C, H, W = x_nchw.shape
    D = params["w1"].shape[3]
    assert params["w2"].shape[2] == D and params["w2"].shape[3] == D
    assert C == D, "Residual skip-add requires in_channels == depth (as in PyTorch)."

    # NCHW -> NHWC -> lane-merged (N, H, W*C).
    x = jnp.transpose(x_nchw, (0, 2, 3, 1)).astype(jnp.float32)
    x = x.reshape(N, H, W * C)

    band1 = _build_bands(params["w1"], W)                     # (3, W*C, W*D)
    band2 = _build_bands(params["w2"], W)                     # (3, W*D, W*D)
    b1 = jnp.tile(params["b1"].astype(jnp.float32), W).reshape(1, W * D)
    b2 = jnp.tile(params["b2"].astype(jnp.float32), W).reshape(1, W * D)

    # Fold batch elements per grid step, but keep >= 2 steps when N >= 2 so the
    # "parallel" batch axis can shard across both TensorCores on v7x.
    TB = N // 2 if (N >= 2 and N % 2 == 0) else 1
    grid = (N // TB,)

    kernel = functools.partial(_residual_kernel, H=H, W=W, C=C, D=D)

    out = pl.pallas_call(
        kernel,
        out_shape=jax.ShapeDtypeStruct((N, H, W * D), jnp.float32),
        grid=grid,
        in_specs=[
            pl.BlockSpec((TB, H, W * C), lambda n: (n, 0, 0)),
            pl.BlockSpec((3, W * C, W * D), lambda n: (0, 0, 0)),
            pl.BlockSpec((1, W * D), lambda n: (0, 0)),
            pl.BlockSpec((3, W * D, W * D), lambda n: (0, 0, 0)),
            pl.BlockSpec((1, W * D), lambda n: (0, 0)),
        ],
        out_specs=pl.BlockSpec((TB, H, W * D), lambda n: (n, 0, 0)),
        scratch_shapes=[
            pltpu.VMEM((TB, H + 2, W * C), jnp.float32),
            pltpu.VMEM((TB, H + 2, W * D), jnp.float32),
        ],
        compiler_params=pltpu.CompilerParams(
            dimension_semantics=("parallel",)),
    )(x, band1, b1, band2, b2)

    out = out.reshape(N, H, W, D)
    return jnp.transpose(out, (0, 3, 1, 2))                   # NHWC -> NCHW


# ---------------------------------------------------------------------------
# Parameters (deterministic synthetic init) + pure-JAX reference.
# ---------------------------------------------------------------------------
def init_params(key, in_channels, depth):
    # TODO(synk): PyTorch uses its default Conv2d init; synthetic scaled-normal
    # init here since this is a synthetic kernel, not a checkpoint load.
    k1, k2, k3, k4 = jax.random.split(key, 4)
    std1 = (2.0 / (9 * in_channels)) ** 0.5
    std2 = (2.0 / (9 * depth)) ** 0.5
    return {
        "w1": jax.random.normal(k1, (3, 3, in_channels, depth), jnp.float32) * std1,
        "b1": jax.random.normal(k2, (depth,), jnp.float32) * 0.1,
        "w2": jax.random.normal(k3, (3, 3, depth, depth), jnp.float32) * std2,
        "b2": jax.random.normal(k4, (depth,), jnp.float32) * 0.1,
    }


def residual_reference(params, x_nchw):
    """Pure-JAX reference matching the PyTorch module (for a correctness check)."""
    x = jnp.transpose(x_nchw, (0, 2, 3, 1)).astype(jnp.float32)
    h = jnp.maximum(x, 0.0)
    h = jax.lax.conv_general_dilated(
        h, params["w1"], (1, 1), ((1, 1), (1, 1)),
        dimension_numbers=("NHWC", "HWIO", "NHWC")) + params["b1"]
    h = jnp.maximum(h, 0.0)
    h = jax.lax.conv_general_dilated(
        h, params["w2"], (1, 1), ((1, 1), (1, 1)),
        dimension_numbers=("NHWC", "HWIO", "NHWC")) + params["b2"]
    h = jnp.maximum(h, 0.0)
    return jnp.transpose(x + h, (0, 3, 1, 2))


if __name__ == "__main__":
    key = jax.random.PRNGKey(0)
    kp, kx = jax.random.split(key)

    batch, channels, spatial = 2, 16, 16          # in_channels == depth == 16
    x = jax.random.normal(kx, (batch, channels, spatial, spatial), jnp.float32)
    params = init_params(kp, channels, channels)

    out = jax.block_until_ready(jax.jit(residual_forward)(params, x))
    assert out.shape == (batch, channels, spatial, spatial)
    assert out.dtype == jnp.float32

    ref = jax.block_until_ready(jax.jit(residual_reference)(params, x))
    assert jnp.allclose(out, ref, rtol=1e-3, atol=1e-3), "mismatch vs reference"

    print("KERNEL_OK")
</pallas_src>

<mosaic_0001>
module attributes {stable_mosaic.version = 11 : i64} {
  func.func @_residual_kernel(%arg0: i32, %arg1: memref<1x16x256xf32, #tpu.memory_space<vmem>>, %arg2: memref<3x256x256xf32, #tpu.memory_space<vmem>>, %arg3: memref<1x256xf32, #tpu.memory_space<vmem>>, %arg4: memref<3x256x256xf32, #tpu.memory_space<vmem>>, %arg5: memref<1x256xf32, #tpu.memory_space<vmem>>, %arg6: memref<1x16x256xf32, #tpu.memory_space<vmem>>, %arg7: memref<1x18x256xf32, #tpu.memory_space<vmem>>, %arg8: memref<1x18x256xf32, #tpu.memory_space<vmem>>) attributes {dimension_semantics = [#tpu.dimension_semantics<parallel>], iteration_bounds = array<i64: 2>, scalar_prefetch = 0 : i64, scratch_operands = 2 : i64, tpu.core_type = #tpu.core_type<tc>, window_params = [{transform_indices = @transform_0, window_bounds = array<i64: 1, 16, 256>}, {pipeline_mode = #tpu.pipeline_mode<synchronous>, transform_indices = @transform_1, window_bounds = array<i64: 3, 256, 256>}, {pipeline_mode = #tpu.pipeline_mode<synchronous>, transform_indices = @transform_2, window_bounds = array<i64: 1, 256>}, {pipeline_mode = #tpu.pipeline_mode<synchronous>, transform_indices = @transform_3, window_bounds = array<i64: 3, 256, 256>}, {pipeline_mode = #tpu.pipeline_mode<synchronous>, transform_indices = @transform_4, window_bounds = array<i64: 1, 256>}, {transform_indices = @transform_5, window_bounds = array<i64: 1, 16, 256>}]} {
    %c0 = arith.constant 0 : index
    %c0_0 = arith.constant 0 : index
    %c0_1 = arith.constant 0 : index
    %0 = vector.load %arg1[%c0, %c0_0, %c0_1] : memref<1x16x256xf32, #tpu.memory_space<vmem>>, vector<1x16x256xf32>
    %cst = arith.constant 0.000000e+00 : f32
    %1 = vector.broadcast %cst : f32 to vector<1x1x256xf32>
    %c0_2 = arith.constant 0 : index
    %c0_3 = arith.constant 0 : index
    %c0_4 = arith.constant 0 : index
    %2 = vector.load %arg7[%c0_2, %c0_3, %c0_4] : memref<1x18x256xf32, #tpu.memory_space<vmem>>, vector<1x1x256xf32>
    tpu.vector_store %arg7[%c0_2, %c0_3, %c0_4], %1 {strides = array<i32>} : memref<1x18x256xf32, #tpu.memory_space<vmem>>, vector<1x1x256xf32>,
    %c0_5 = arith.constant 0 : index
    %c17 = arith.constant 17 : index
    %c0_6 = arith.constant 0 : index
    %3 = vector.load %arg7[%c0_5, %c17, %c0_6] : memref<1x18x256xf32, #tpu.memory_space<vmem>>, vector<1x1x256xf32>
    tpu.vector_store %arg7[%c0_5, %c17, %c0_6], %1 {strides = array<i32>} : memref<1x18x256xf32, #tpu.memory_space<vmem>>, vector<1x1x256xf32>,
    %cst_7 = arith.constant 0.000000e+00 : f32
    %4 = vector.broadcast %cst_7 : f32 to vector<1x16x256xf32>
    %5 = arith.maximumf %0, %4 : vector<1x16x256xf32>
    %c0_8 = arith.constant 0 : index
    %c1 = arith.constant 1 : index
    %c0_9 = arith.constant 0 : index
    %6 = vector.load %arg7[%c0_8, %c1, %c0_9] : memref<1x18x256xf32, #tpu.memory_space<vmem>>, vector<1x16x256xf32>
    tpu.vector_store %arg7[%c0_8, %c1, %c0_9], %5 {strides = array<i32>} : memref<1x18x256xf32, #tpu.memory_space<vmem>>, vector<1x16x256xf32>,
    %c0_10 = arith.constant 0 : index
    %c0_11 = arith.constant 0 : index
    %7 = vector.load %arg3[%c0_10, %c0_11] : memref<1x256xf32, #tpu.memory_space<vmem>>, vector<1x256xf32>
    %cst_12 = arith.constant 0.000000e+00 : f32
    %8 = vector.broadcast %cst_12 : f32 to vector<16x256xf32>
    %c0_13 = arith.constant 0 : index
    %c0_14 = arith.constant 0 : index
    %c0_15 = arith.constant 0 : index
    %9 = vector.load %arg7[%c0_13, %c0_14, %c0_15] : memref<1x18x256xf32, #tpu.memory_space<vmem>>, vector<1x16x256xf32>
    %10 = vector.shape_cast %9 : vector<1x16x256xf32> to vector<16x256xf32>
    %c0_16 = arith.constant 0 : index
    %c0_17 = arith.constant 0 : index
    %c0_18 = arith.constant 0 : index
    %11 = vector.load %arg2[%c0_16, %c0_17, %c0_18] : memref<3x256x256xf32, #tpu.memory_space<vmem>>, vector<1x256x256xf32>
    %12 = vector.shape_cast %11 : vector<1x256x256xf32> to vector<256x256xf32>
    %cst_19 = arith.constant dense<0.000000e+00> : vector<16x256xf32>
    %13 = tpu.matmul %10, %12, %cst_19 {dimension_numbers = #tpu.dot_dimension_numbers<[1], [0], [0], [1], [0, 0, 1, 1], [], []>} : vector<16x256xf32>, vector<256x256xf32>, vector<16x256xf32> -> vector<16x256xf32>
    %14 = arith.addf %8, %13 : vector<16x256xf32>
    %c0_20 = arith.constant 0 : index
    %c1_21 = arith.constant 1 : index
    %c0_22 = arith.constant 0 : index
    %15 = vector.load %arg7[%c0_20, %c1_21, %c0_22] : memref<1x18x256xf32, #tpu.memory_space<vmem>>, vector<1x16x256xf32>
    %16 = vector.shape_cast %15 : vector<1x16x256xf32> to vector<16x256xf32>
    %c1_23 = arith.constant 1 : index
    %c0_24 = arith.constant 0 : index
    %c0_25 = arith.constant 0 : index
    %17 = vector.load %arg2[%c1_23, %c0_24, %c0_25] : memref<3x256x256xf32, #tpu.memory_space<vmem>>, vector<1x256x256xf32>
    %18 = vector.shape_cast %17 : vector<1x256x256xf32> to vector<256x256xf32>
    %cst_26 = arith.constant dense<0.000000e+00> : vector<16x256xf32>
    %19 = tpu.matmul %16, %18, %cst_26 {dimension_numbers = #tpu.dot_dimension_numbers<[1], [0], [0], [1], [0, 0, 1, 1], [], []>} : vector<16x256xf32>, vector<256x256xf32>, vector<16x256xf32> -> vector<16x256xf32>
    %20 = arith.addf %14, %19 : vector<16x256xf32>
    %c0_27 = arith.constant 0 : index
    %c2 = arith.constant 2 : index
    %c0_28 = arith.constant 0 : index
    %21 = vector.load %arg7[%c0_27, %c2, %c0_28] : memref<1x18x256xf32, #tpu.memory_space<vmem>>, vector<1x16x256xf32>
    %22 = vector.shape_cast %21 : vector<1x16x256xf32> to vector<16x256xf32>
    %c2_29 = arith.constant 2 : index
    %c0_30 = arith.constant 0 : index
    %c0_31 = arith.constant 0 : index
    %23 = vector.load %arg2[%c2_29, %c0_30, %c0_31] : memref<3x256x256xf32, #tpu.memory_space<vmem>>, vector<1x256x256xf32>
    %24 = vector.shape_cast %23 : vector<1x256x256xf32> to vector<256x256xf32>
    %cst_32 = arith.constant dense<0.000000e+00> : vector<16x256xf32>
    %25 = tpu.matmul %22, %24, %cst_32 {dimension_numbers = #tpu.dot_dimension_numbers<[1], [0], [0], [1], [0, 0, 1, 1], [], []>} : vector<16x256xf32>, vector<256x256xf32>, vector<16x256xf32> -> vector<16x256xf32>
    %26 = arith.addf %20, %25 : vector<16x256xf32>
    %27 = vector.broadcast %7 : vector<1x256xf32> to vector<16x256xf32>
    %28 = arith.addf %26, %27 : vector<16x256xf32>
    %cst_33 = arith.constant 0.000000e+00 : f32
    %29 = vector.broadcast %cst_33 : f32 to vector<16x256xf32>
    %30 = arith.maximumf %28, %29 : vector<16x256xf32>
    %cst_34 = arith.constant 0.000000e+00 : f32
    %31 = vector.broadcast %cst_34 : f32 to vector<1x1x256xf32>
    %c0_35 = arith.constant 0 : index
    %c0_36 = arith.constant 0 : index
    %c0_37 = arith.constant 0 : index
    %32 = vector.load %arg8[%c0_35, %c0_36, %c0_37] : memref<1x18x256xf32, #tpu.memory_space<vmem>>, vector<1x1x256xf32>
    tpu.vector_store %arg8[%c0_35, %c0_36, %c0_37], %31 {strides = array<i32>} : memref<1x18x256xf32, #tpu.memory_space<vmem>>, vector<1x1x256xf32>,
    %c0_38 = arith.constant 0 : index
    %c17_39 = arith.constant 17 : index
    %c0_40 = arith.constant 0 : index
    %33 = vector.load %arg8[%c0_38, %c17_39, %c0_40] : memref<1x18x256xf32, #tpu.memory_space<vmem>>, vector<1x1x256xf32>
    tpu.vector_store %arg8[%c0_38, %c17_39, %c0_40], %31 {strides = array<i32>} : memref<1x18x256xf32, #tpu.memory_space<vmem>>, vector<1x1x256xf32>,
    %34 = vector.shape_cast %30 : vector<16x256xf32> to vector<1x16x256xf32>
    %c0_41 = arith.constant 0 : index
    %c1_42 = arith.constant 1 : index
    %c0_43 = arith.constant 0 : index
    %35 = vector.load %arg8[%c0_41, %c1_42, %c0_43] : memref<1x18x256xf32, #tpu.memory_space<vmem>>, vector<1x16x256xf32>
    tpu.vector_store %arg8[%c0_41, %c1_42, %c0_43], %34 {strides = array<i32>} : memref<1x18x256xf32, #tpu.memory_space<vmem>>, vector<1x16x256xf32>,
    %c0_44 = arith.constant 0 : index
    %c0_45 = arith.constant 0 : index
    %36 = vector.load %arg5[%c0_44, %c0_45] : memref<1x256xf32, #tpu.memory_space<vmem>>, vector<1x256xf32>
    %cst_46 = arith.constant 0.000000e+00 : f32
    %37 = vector.broadcast %cst_46 : f32 to vector<16x256xf32>
    %c0_47 = arith.constant 0 : index
    %c0_48 = arith.constant 0 : index
    %c0_49 = arith.constant 0 : index
    %38 = vector.load %arg8[%c0_47, %c0_48, %c0_49] : memref<1x18x256xf32, #tpu.memory_space<vmem>>, vector<1x16x256xf32>
    %39 = vector.shape_cast %38 : vector<1x16x256xf32> to vector<16x256xf32>
    %c0_50 = arith.constant 0 : index
    %c0_51 = arith.constant 0 : index
    %c0_52 = arith.constant 0 : index
    %40 = vector.load %arg4[%c0_50, %c0_51, %c0_52] : memref<3x256x256xf32, #tpu.memory_space<vmem>>, vector<1x256x256xf32>
    %41 = vector.shape_cast %40 : vector<1x256x256xf32> to vector<256x256xf32>
    %cst_53 = arith.constant dense<0.000000e+00> : vector<16x256xf32>
    %42 = tpu.matmul %39, %41, %cst_53 {dimension_numbers = #tpu.dot_dimension_numbers<[1], [0], [0], [1], [0, 0, 1, 1], [], []>} : vector<16x256xf32>, vector<256x256xf32>, vector<16x256xf32> -> vector<16x256xf32>
    %43 = arith.addf %37, %42 : vector<16x256xf32>
    %c0_54 = arith.constant 0 : index
    %c1_55 = arith.constant 1 : index
    %c0_56 = arith.constant 0 : index
    %44 = vector.load %arg8[%c0_54, %c1_55, %c0_56] : memref<1x18x256xf32, #tpu.memory_space<vmem>>, vector<1x16x256xf32>
    %45 = vector.shape_cast %44 : vector<1x16x256xf32> to vector<16x256xf32>
    %c1_57 = arith.constant 1 : index
    %c0_58 = arith.constant 0 : index
    %c0_59 = arith.constant 0 : index
    %46 = vector.load %arg4[%c1_57, %c0_58, %c0_59] : memref<3x256x256xf32, #tpu.memory_space<vmem>>, vector<1x256x256xf32>
    %47 = vector.shape_cast %46 : vector<1x256x256xf32> to vector<256x256xf32>
    %cst_60 = arith.constant dense<0.000000e+00> : vector<16x256xf32>
    %48 = tpu.matmul %45, %47, %cst_60 {dimension_numbers = #tpu.dot_dimension_numbers<[1], [0], [0], [1], [0, 0, 1, 1], [], []>} : vector<16x256xf32>, vector<256x256xf32>, vector<16x256xf32> -> vector<16x256xf32>
    %49 = arith.addf %43, %48 : vector<16x256xf32>
    %c0_61 = arith.constant 0 : index
    %c2_62 = arith.constant 2 : index
    %c0_63 = arith.constant 0 : index
    %50 = vector.load %arg8[%c0_61, %c2_62, %c0_63] : memref<1x18x256xf32, #tpu.memory_space<vmem>>, vector<1x16x256xf32>
    %51 = vector.shape_cast %50 : vector<1x16x256xf32> to vector<16x256xf32>
    %c2_64 = arith.constant 2 : index
    %c0_65 = arith.constant 0 : index
    %c0_66 = arith.constant 0 : index
    %52 = vector.load %arg4[%c2_64, %c0_65, %c0_66] : memref<3x256x256xf32, #tpu.memory_space<vmem>>, vector<1x256x256xf32>
    %53 = vector.shape_cast %52 : vector<1x256x256xf32> to vector<256x256xf32>
    %cst_67 = arith.constant dense<0.000000e+00> : vector<16x256xf32>
    %54 = tpu.matmul %51, %53, %cst_67 {dimension_numbers = #tpu.dot_dimension_numbers<[1], [0], [0], [1], [0, 0, 1, 1], [], []>} : vector<16x256xf32>, vector<256x256xf32>, vector<16x256xf32> -> vector<16x256xf32>
    %55 = arith.addf %49, %54 : vector<16x256xf32>
    %56 = vector.broadcast %36 : vector<1x256xf32> to vector<16x256xf32>
    %57 = arith.addf %55, %56 : vector<16x256xf32>
    %cst_68 = arith.constant 0.000000e+00 : f32
    %58 = vector.broadcast %cst_68 : f32 to vector<16x256xf32>
    %59 = arith.maximumf %57, %58 : vector<16x256xf32>
    %60 = vector.shape_cast %59 : vector<16x256xf32> to vector<1x16x256xf32>
    %61 = arith.addf %0, %60 : vector<1x16x256xf32>
    %c0_69 = arith.constant 0 : index
    %c0_70 = arith.constant 0 : index
    %c0_71 = arith.constant 0 : index
    %62 = vector.load %arg6[%c0_69, %c0_70, %c0_71] : memref<1x16x256xf32, #tpu.memory_space<vmem>>, vector<1x16x256xf32>
    tpu.vector_store %arg6[%c0_69, %c0_70, %c0_71], %61 {strides = array<i32>} : memref<1x16x256xf32, #tpu.memory_space<vmem>>, vector<1x16x256xf32>,
    return
  }
  func.func @transform_0(%arg0: i32) -> (i32, i32, i32) {
    %c0_i32 = arith.constant 0 : i32
    %c0_i32_0 = arith.constant 0 : i32
    %c0_i32_1 = arith.constant 0 : i32
    return %arg0, %c0_i32, %c0_i32_0 : i32, i32, i32
  }
  func.func @transform_1(%arg0: i32) -> (i32, i32, i32) {
    %c0_i32 = arith.constant 0 : i32
    %c0_i32_0 = arith.constant 0 : i32
    %c0_i32_1 = arith.constant 0 : i32
    %c0_i32_2 = arith.constant 0 : i32
    return %c0_i32, %c0_i32_0, %c0_i32_1 : i32, i32, i32
  }
  func.func @transform_2(%arg0: i32) -> (i32, i32) {
    %c0_i32 = arith.constant 0 : i32
    %c0_i32_0 = arith.constant 0 : i32
    %c0_i32_1 = arith.constant 0 : i32
    return %c0_i32, %c0_i32_0 : i32, i32
  }
  func.func @transform_3(%arg0: i32) -> (i32, i32, i32) {
    %c0_i32 = arith.constant 0 : i32
    %c0_i32_0 = arith.constant 0 : i32
    %c0_i32_1 = arith.constant 0 : i32
    %c0_i32_2 = arith.constant 0 : i32
    return %c0_i32, %c0_i32_0, %c0_i32_1 : i32, i32, i32
  }
  func.func @transform_4(%arg0: i32) -> (i32, i32) {
    %c0_i32 = arith.constant 0 : i32
    %c0_i32_0 = arith.constant 0 : i32
    %c0_i32_1 = arith.constant 0 : i32
    return %c0_i32, %c0_i32_0 : i32, i32
  }
  func.func @transform_5(%arg0: i32) -> (i32, i32, i32) {
    %c0_i32 = arith.constant 0 : i32
    %c0_i32_0 = arith.constant 0 : i32
    %c0_i32_1 = arith.constant 0 : i32
    return %arg0, %c0_i32, %c0_i32_0 : i32, i32, i32
  }
}

</mosaic_0001>

<llo_original>
// kernel: tile.13
$region0: #{tile.13}
  #allocation0 [shape = 's32[1]{0}', space=sflag, size = 0x4, scoped, tag = 'scoped memory for tile.13']
  %s0 = inlined_call_operand.vmem [shape: f32[16], index: 0, kind: input, shape index: {}]
  %s1 = inlined_call_operand.vmem [shape: f32[16,16], index: 1, kind: output, shape index: {}]
  // Predicated region
  $region2: #{tile.13} parent=0 // pred_check
    _
  $region3: #{tile.13} parent=0 // pred_check_branch
    %3 = sbr.rel (0) target = $region5
  $region4: #{tile.13} parent=0 // pred_region
    _
  $region5: #{tile.13} parent=0 // pred_fallthru
    _
  %v4 = vld [vmem:[%s0] ss:$0 sm:$0xff]
  %5 = vst [vmem:[%s1] sm:$0xff] %v4
  %s6 = scalar_lea.vmem %s1, 8
  %7 = vst [vmem:[%s6] sm:$0xff] %v4

// kernel: tile.14
$region0: #{tile.14}
  %s0 = inlined_call_operand.vmem [shape: f32[16,16], index: 0, kind: input, shape index: {}]
  %s1 = inlined_call_operand.vmem [shape: f32[1,256], index: 1, kind: output, shape index: {}]
  $region1: #{tile.14} parent=0
    #allocation0 [shape = 'u8[8192]{0}', space=vmem, size = 0x2000, scoped, tag = 'scoped mem for output reshape']
    %s2 = smov 3
    %v3 = vld [vmem:[%s0] ss:$8 sm:%s2]
    %vm4 = vcmask 130048
    %5 = vst.msk [vmem:[#allocation0] ss:$8 sm:$0x3] %vm4, %v3
    %s6 = scalar_lea.vmem %s0, 7
    %s7 = smov 3
    %v8 = vld [vmem:[%s6] ss:$8 sm:%s7]
    %9 = vrot.lane.b32.xlu0 %v8, 112
    %v10 = vpop.permute.xlu0 %9
    %vm11 = vcmask 1048448
    %12 = vst.msk [vmem:[#allocation0] ss:$8 sm:$0x3] %vm11, %v10
    %s13 = scalar_lea.vmem %s0, 6
    %s14 = smov 3
    %v15 = vld [vmem:[%s13] ss:$8 sm:%s14]
    %16 = vrot.lane.b32.xlu0 %v15, 96
    %v17 = vpop.permute.xlu0 %16
    %vm18 = vcmask 917248
    %19 = vst.msk [vmem:[#allocation0] ss:$8 sm:$0x3] %vm18, %v17
    %s20 = scalar_lea.vmem %s0, 5
    %s21 = smov 3
    %v22 = vld [vmem:[%s20] ss:$8 sm:%s21]
    %23 = vrot.lane.b32.xlu0 %v22, 80
    %v24 = vpop.permute.xlu0 %23
    %vm25 = vcmask 786048
    %26 = vst.msk [vmem:[#allocation0] ss:$8 sm:$0x3] %vm25, %v24
    %s27 = scalar_lea.vmem %s0, 4
    %s28 = smov 3
    %v29 = vld [vmem:[%s27] ss:$8 sm:%s28]
    %30 = vrot.lane.b32.xlu0 %v29, 64
    %v31 = vpop.permute.xlu0 %30
    %vm32 = vcmask 654848
    %33 = vst.msk [vmem:[#allocation0] ss:$8 sm:$0x3] %vm32, %v31
    %s34 = scalar_lea.vmem %s0, 3
    %s35 = smov 3
    %v36 = vld [vmem:[%s34] ss:$8 sm:%s35]
    %37 = vrot.lane.b32.xlu0 %v36, 48
    %v38 = vpop.permute.xlu0 %37
    %vm39 = vcmask 523648
    %40 = vst.msk [vmem:[#allocation0] ss:$8 sm:$0x3] %vm39, %v38
    %s41 = scalar_lea.vmem %s0, 2
    %s42 = smov 3
    %v43 = vld [vmem:[%s41] ss:$8 sm:%s42]
    %44 = vrot.lane.b32.xlu0 %v43, 32
    %v45 = vpop.permute.xlu0 %44
    %vm46 = vcmask 392448
    %47 = vst.msk [vmem:[#allocation0] ss:$8 sm:$0x3] %vm46, %v45
    %s48 = scalar_lea.vmem %s0, 1
    %s49 = smov 3
    %v50 = vld [vmem:[%s48] ss:$8 sm:%s49]
    %51 = vrot.lane.b32.xlu0 %v50, 16
    %v52 = vpop.permute.xlu0 %51
    %vm53 = vcmask 261248
    %54 = vst.msk [vmem:[#allocation0] ss:$8 sm:$0x3] %vm53, %v52
    %s56 = sshll.u32 1, 1
    %s57 = ssub.s32 %s56, 1
    %v59 = vld [vmem:[#allocation0] sm:%s57]
    %s60 = sshll.u32 1, 1
    %s61 = ssub.s32 %s60, 1
    %62 = vst [vmem:[%s1] sm:%s61] %v59
    %s63 = scalar_lea.vmem [#allocation0], 8
    %v64 = vld [vmem:[%s63] sm:%s57]
    %s65 = sshll.u32 1, 1
    %s66 = ssub.s32 %s65, 1
    %s67 = scalar_lea.vmem %s1, 1
    %68 = vst [vmem:[%s67] sm:%s66] %v64

// kernel: residual_forward.1
$region0: #{residual_forward.1}
  #allocation0 [shape = 'u32[]', space=smem, size = 0x4, offset = 0x4, fixed_abs, tag = 'smem constant byte address 0x4 - core index']
  #allocation1 [shape = 'u32[144,128]{1,0:T(1,128)}', space=vmem, size = 0x12000, scoped, tag = 'internal scratch']
  #allocation2 [shape = 'f32[1,18,256]{2,1,0:T(8,128)}', space=vmem, size = 0x6000, scoped, tag = 'scratch operand']
  #allocation3 [shape = 'f32[1,18,256]{2,1,0:T(8,128)}', space=vmem, size = 0x6000, scoped, tag = 'scratch operand']
  %s0 = inlined_call_operand.vmem [shape: f32[2,16,256], index: 0, kind: input, shape index: {}]
  %s1 = inlined_call_operand.vmem [shape: f32[3,256,256], index: 1, kind: input, shape index: {}]
  %s2 = inlined_call_operand.vmem [shape: f32[1,256], index: 2, kind: input, shape index: {}]
  %s3 = inlined_call_operand.vmem [shape: f32[3,256,256], index: 3, kind: input, shape index: {}]
  %s4 = inlined_call_operand.vmem [shape: f32[1,256], index: 4, kind: input, shape index: {}]
  %s5 = inlined_call_operand.vmem [shape: f32[2,16,256], index: 5, kind: output, shape index: {}]
  %s6 = sld [smem:[#allocation0]]
  $region53: #{residual_forward.1} parent=0
    _
  %s8 = ssub.s32 1, %s6
  %s9 = scalar_select 0, %s8, %s6
  loop: start=0, step=1, limit=4
  $region2: #{residual_forward.1} parent=0 // loop_pre_header
    _
  $region3: #{residual_forward.1} parent=0 // loop_header
    %s11 = sphi 0, %s15
    %p12 = scmp.ge.s32.totalorder %s11, 4
    %s21 = sphi 0, %s23
    %s24 = sphi 0, %s21
    %s25 = sphi 0, %s24
    %s41 = sphi 0, %s25
    %s45 = sphi 0, %s45
    %s47 = sphi 0, %s45
    %s48 = sphi 0, %s47
    %s62 = sphi 0, %s48
    %s66 = sphi 0, %s66
    %s68 = sphi 0, %s66
    %s69 = sphi 0, %s68
    %s83 = sphi 0, %s69
    %s87 = sphi 0, %s87
    %s89 = sphi 0, %s87
    %s90 = sphi 0, %s89
    %s104 = sphi 0, %s90
    %s108 = sphi 0, %s108
    %s110 = sphi 0, %s108
    %s111 = sphi 0, %s110
    %s125 = sphi 0, %s111
    %s131 = sphi 0, %s133
    %s134 = sphi 0, %s131
    %s135 = sphi 0, %s134
    %s151 = sphi 0, %s135
  $region4: #{residual_forward.1} parent=0 // loop_header_branch
    %14 = sbr.rel (%p12) target = $region8
  $region5: #{residual_forward.1} parent=0 // loop_body
    %s16 = ssub.s32 %s11, 1
    %s17 = ssub.s32 %s11, 2
    %s18 = sadd.s32 %s11, 1
    %s19 = ssub.s32 %s11, %s18
    %p20 = scmp.eq.s32.totalorder %s19, 0
    %s22 = sadd.s32 %s21, 1
    %s23 = scalar_select %p20, %s21, %s22
    %p26 = pneg %p20
    %p27 = scmp.eq.s32.totalorder %s11, 1
    %p28 = por %p26, %p27
    %p29 = scmp.ne.s32.totalorder %s21, %s24
    %p30 = scmp.eq.s32.totalorder %s11, 0
    %p31 = por %p29, %p30
    %p32 = scmp.ne.s32.totalorder %s21, %s24
    %p33 = scmp.eq.s32.totalorder %s16, 1
    %p34 = por %p32, %p33
    %p35 = scmp.ne.s32.totalorder %s24, %s25
    %p36 = scmp.eq.s32.totalorder %s16, 0
    %p37 = por %p35, %p36
    %p38 = scmp.ne.s32.totalorder %s24, %s25
    %p39 = scmp.eq.s32.totalorder %s17, 1
    %p40 = por %p38, %p39
    %p42 = scmp.ne.s32.totalorder %s25, %s41
    %p43 = scmp.eq.s32.totalorder %s17, 0
    %p44 = por %p42, %p43
    %s46 = sadd.s32 %s45, 1
    %p49 = scmp.eq.s32.totalorder %s11, 1
    %p50 = scmp.ne.s32.totalorder %s45, %s47
    %p51 = scmp.eq.s32.totalorder %s11, 0
    %p52 = por %p50, %p51
    %p53 = scmp.ne.s32.totalorder %s45, %s47
    %p54 = scmp.eq.s32.totalorder %s16, 1
    %p55 = por %p53, %p54
    %p56 = scmp.ne.s32.totalorder %s47, %s48
    %p57 = scmp.eq.s32.totalorder %s16, 0
    %p58 = por %p56, %p57
    %p59 = scmp.ne.s32.totalorder %s47, %s48
    %p60 = scmp.eq.s32.totalorder %s17, 1
    %p61 = por %p59, %p60
    %p63 = scmp.ne.s32.totalorder %s48, %s62
    %p64 = scmp.eq.s32.totalorder %s17, 0
    %p65 = por %p63, %p64
    %s67 = sadd.s32 %s66, 1
    %p70 = scmp.eq.s32.totalorder %s11, 1
    %p71 = scmp.ne.s32.totalorder %s66, %s68
    %p72 = scmp.eq.s32.totalorder %s11, 0
    %p73 = por %p71, %p72
    %p74 = scmp.ne.s32.totalorder %s66, %s68
    %p75 = scmp.eq.s32.totalorder %s16, 1
    %p76 = por %p74, %p75
    %p77 = scmp.ne.s32.totalorder %s68, %s69
    %p78 = scmp.eq.s32.totalorder %s16, 0
    %p79 = por %p77, %p78
    %p80 = scmp.ne.s32.totalorder %s68, %s69
    %p81 = scmp.eq.s32.totalorder %s17, 1
    %p82 = por %p80, %p81
    %p84 = scmp.ne.s32.totalorder %s69, %s83
    %p85 = scmp.eq.s32.totalorder %s17, 0
    %p86 = por %p84, %p85
    %s88 = sadd.s32 %s87, 1
    %p91 = scmp.eq.s32.totalorder %s11, 1
    %p92 = scmp.ne.s32.totalorder %s87, %s89
    %p93 = scmp.eq.s32.totalorder %s11, 0
    %p94 = por %p92, %p93
    %p95 = scmp.ne.s32.totalorder %s87, %s89
    %p96 = scmp.eq.s32.totalorder %s16, 1
    %p97 = por %p95, %p96
    %p98 = scmp.ne.s32.totalorder %s89, %s90
    %p99 = scmp.eq.s32.totalorder %s16, 0
    %p100 = por %p98, %p99
    %p101 = scmp.ne.s32.totalorder %s89, %s90
    %p102 = scmp.eq.s32.totalorder %s17, 1
    %p103 = por %p101, %p102
    %p105 = scmp.ne.s32.totalorder %s90, %s104
    %p106 = scmp.eq.s32.totalorder %s17, 0
    %p107 = por %p105, %p106
    %s109 = sadd.s32 %s108, 1
    %p112 = scmp.eq.s32.totalorder %s11, 1
    %p113 = scmp.ne.s32.totalorder %s108, %s110
    %p114 = scmp.eq.s32.totalorder %s11, 0
    %p115 = por %p113, %p114
    %p116 = scmp.ne.s32.totalorder %s108, %s110
    %p117 = scmp.eq.s32.totalorder %s16, 1
    %p118 = por %p116, %p117
    %p119 = scmp.ne.s32.totalorder %s110, %s111
    %p120 = scmp.eq.s32.totalorder %s16, 0
    %p121 = por %p119, %p120
    %p122 = scmp.ne.s32.totalorder %s110, %s111
    %p123 = scmp.eq.s32.totalorder %s17, 1
    %p124 = por %p122, %p123
    %p126 = scmp.ne.s32.totalorder %s111, %s125
    %p127 = scmp.eq.s32.totalorder %s17, 0
    %p128 = por %p126, %p127
    %s129 = ssub.s32 %s11, %s18
    %p130 = scmp.eq.s32.totalorder %s129, 0
    %s132 = sadd.s32 %s131, 1
    %s133 = scalar_select %p130, %s131, %s132
    %p136 = pneg %p130
    %p137 = scmp.eq.s32.totalorder %s11, 1
    %p138 = por %p136, %p137
    %p139 = scmp.ne.s32.totalorder %s131, %s134
    %p140 = scmp.eq.s32.totalorder %s11, 0
    %p141 = por %p139, %p140
    %p142 = scmp.ne.s32.totalorder %s131, %s134
    %p143 = scmp.eq.s32.totalorder %s16, 1
    %p144 = por %p142, %p143
    %p145 = scmp.ne.s32.totalorder %s134, %s135
    %p146 = scmp.eq.s32.totalorder %s16, 0
    %p147 = por %p145, %p146
    %p148 = scmp.ne.s32.totalorder %s134, %s135
    %p149 = scmp.eq.s32.totalorder %s17, 1
    %p150 = por %p148, %p149
    %p152 = scmp.ne.s32.totalorder %s135, %s151
    %p153 = scmp.eq.s32.totalorder %s17, 0
    %p154 = por %p152, %p153
    %p155 = scmp.le.s32.totalorder 1, %s11
    %p156 = scmp.lt.s32.totalorder %s11, 3
    %p157 = pnand %p155, %p156
    %p158 = pneg %p157
    // Predicated region
    $region9: #{residual_forward.1} parent=5 // pred_check
      _
    $region10: #{residual_forward.1} parent=5 // pred_check_branch
      %160 = sbr.rel (%p157) target = $region12
    $region11: #{residual_forward.1} parent=5 // pred_region
      %s161 = ssub.s32 %s11, 1
      // Predicated region
      $region13: #{residual_forward.1} parent=11 // pred_check
        %p162 = pneg %p58
      $region14: #{residual_forward.1} parent=11 // pred_check_branch
        %164 = sbr.rel (%p162) target = $region16
      $region15: #{residual_forward.1} parent=11 // pred_region
        _
      $region16: #{residual_forward.1} parent=11 // pred_fallthru
        _
      // Predicated region
      $region17: #{residual_forward.1} parent=11 // pred_check
        %p165 = pneg %p79
      $region18: #{residual_forward.1} parent=11 // pred_check_branch
        %167 = sbr.rel (%p165) target = $region20
      $region19: #{residual_forward.1} parent=11 // pred_region
        _
      $region20: #{residual_forward.1} parent=11 // pred_fallthru
        _
      // Predicated region
      $region21: #{residual_forward.1} parent=11 // pred_check
        %p168 = pneg %p100
      $region22: #{residual_forward.1} parent=11 // pred_check_branch
        %170 = sbr.rel (%p168) target = $region24
      $region23: #{residual_forward.1} parent=11 // pred_region
        _
      $region24: #{residual_forward.1} parent=11 // pred_fallthru
        _
      // Predicated region
      $region25: #{residual_forward.1} parent=11 // pred_check
        %p171 = pneg %p121
      $region26: #{residual_forward.1} parent=11 // pred_check_branch
        %173 = sbr.rel (%p171) target = $region28
      $region27: #{residual_forward.1} parent=11 // pred_region
        _
      $region28: #{residual_forward.1} parent=11 // pred_fallthru
        _
    $region12: #{residual_forward.1} parent=5 // pred_fallthru
      _
    %p174 = scmp.lt.s32.totalorder %s11, 2
    // Predicated region
    $region29: #{residual_forward.1} parent=5 // pred_check
      %p175 = pneg %p174
    $region30: #{residual_forward.1} parent=5 // pred_check_branch
      %177 = sbr.rel (%p175) target = $region32
    $region31: #{residual_forward.1} parent=5 // pred_region
      // Predicated region
      $region33: #{residual_forward.1} parent=31 // pred_check
        %p178 = pneg %p31
      $region34: #{residual_forward.1} parent=31 // pred_check_branch
        %180 = sbr.rel (%p178) target = $region36
      $region35: #{residual_forward.1} parent=31 // pred_region
        %p181 = scmp.lt.s32.totalorder %s11, 1
        %s182 = scalar_select %p181, %s11, 1
        %s183 = smul.addr %s182, 4
        %s184 = smul.addr %s183, 8
        %s185 = scalar_lea.vmem %s0, %s184
      $region36: #{residual_forward.1} parent=31 // pred_fallthru
        _
    $region32: #{residual_forward.1} parent=5 // pred_fallthru
      _
    %p186 = scmp.le.s32.totalorder 1, %s11
    %p187 = scmp.lt.s32.totalorder %s11, 3
    %p188 = pnand %p186, %p187
    %p189 = pneg %p188
    // Predicated region
    $region37: #{residual_forward.1} parent=5 // pred_check
      _
    $region38: #{residual_forward.1} parent=5 // pred_check_branch
      %191 = sbr.rel (%p188) target = $region40
    $region39: #{residual_forward.1} parent=5 // pred_region
      %s192 = ssub.s32 %s11, 1
      %p193 = scmp.lt.s32.totalorder %s16, 1
      %s194 = scalar_select %p193, %s16, 1
      %s195 = smul.addr %s194, 4
      %s196 = smul.addr %s195, 8
      %s197 = scalar_lea.vmem %s0, %s196
      %p198 = pneg %p37
      %p199 = pneg %p34
      %p200 = pneg %p58
      %p201 = pneg %p55
      %p202 = pneg %p79
      %p203 = pneg %p76
      %p204 = pneg %p100
      %p205 = pneg %p97
      %p206 = pneg %p121
      %p207 = pneg %p118
      %p208 = pneg %p147
      %p209 = pneg %p144
      %p210 = scmp.lt.s32.totalorder %s16, 1
      %s211 = scalar_select %p210, %s16, 1
      %s212 = smul.addr %s211, 4
      %s213 = smul.addr %s212, 8
      %s214 = scalar_lea.vmem %s5, %s213
      %p215 = scmp.lt.s32.totalorder %s16, 1
      %s216 = scalar_select %p215, %s16, 1
      %s217 = smul.addr %s216, 4
      %s218 = smul.addr %s217, 8
      %s219 = scalar_lea.vmem %s0, %s218
      %p220 = scmp.lt.s32.totalorder %s16, 1
      %s221 = scalar_select %p220, %s16, 1
      %s222 = smul.addr %s221, 4
      %s223 = smul.addr %s222, 8
      %s224 = scalar_lea.vmem %s5, %s223
      %v225 = vld [vmem:[%s219] sm:$0xff]
      %v226 = vld [vmem:[%s219 + $0x8] sm:$0xff]
      %v227 = vld [vmem:[%s219 + $0x10] sm:$0xff]
      %v228 = vld [vmem:[%s219 + $0x18] sm:$0xff]
      %v229 = vlaneseq
      %vm230 = vcmp.ge.s32.totalorder %v229, 0
      %vm231 = vcmp.lt.s32.totalorder %v229, 256
      %vm232 = vmand %vm230, %vm231
      %233 = vst.msk [vmem:[#allocation2] ss:$8 sm:$0x3] %vm232, 0.0
      %234 = vst.msk [vmem:[#allocation2] ss:$8 sm:$0x0] %vm232, 0.0
      %s235 = scalar_lea.vmem [#allocation2], 33
      %236 = vst.msk [vmem:[%s235] ss:$8 sm:$0x3] %vm232, 0.0
      %237 = vst.msk [vmem:[%s235] ss:$8 sm:$0x0] %vm232, 0.0
      %v238 = vmax.f32 %v225, 0.0
      %v239 = vmax.f32 %v226, 0.0
      %v240 = vmax.f32 %v227, 0.0
      %v241 = vmax.f32 %v228, 0.0
      %vm246 = vcmask 1040384
      %v247 = vrot.slane %v238, 7
      %v248 = vrot.slane %v239, 7
      %v249 = vrot.slane %v240, 7
      %v250 = vsel %vm246, %v247, %v249
      %v251 = vrot.slane %v241, 7
      %v252 = vsel %vm246, %v248, %v251
      %259 = vst [vmem:[#allocation2] sm:$0xfe] %v247
      %260 = vst [vmem:[#allocation2 + $0x8] sm:$0xfe] %v248
      %261 = vst [vmem:[#allocation2 + $0x10] sm:$0xff] %v250
      %262 = vst [vmem:[#allocation2 + $0x18] sm:$0xff] %v252
      %263 = vst [vmem:[#allocation2 + $0x20] sm:$0x1] %v249
      %264 = vst [vmem:[#allocation2 + $0x28] sm:$0x1] %v251
      %v265 = vld [vmem:[%s2] sm:$0x3]
      %v266 = vld [vmem:[#allocation2] sm:$0xff]
      %v267 = vld [vmem:[#allocation2 + $0x8] sm:$0xff]
      %v268 = vld [vmem:[#allocation2 + $0x10] sm:$0xff]
      %v269 = vld [vmem:[#allocation2 + $0x18] sm:$0xff]
      %v270 = vld [vmem:[%s1] sm:$0xff]
      %v271 = vld [vmem:[%s1 + $0x8] sm:$0xff]
      %v272 = vld [vmem:[%s1 + $0x10] sm:$0xff]
      %v273 = vld [vmem:[%s1 + $0x18] sm:$0xff]
      %v274 = vld [vmem:[%s1 + $0x20] sm:$0xff]
      %v275 = vld [vmem:[%s1 + $0x28] sm:$0xff]
      %v276 = vld [vmem:[%s1 + $0x30] sm:$0xff]
      %v277 = vld [vmem:[%s1 + $0x38] sm:$0xff]
      %v278 = vld [vmem:[%s1 + $0x40] sm:$0xff]
      %v279 = vld [vmem:[%s1 + $0x48] sm:$0xff]
      %v280 = vld [vmem:[%s1 + $0x50] sm:$0xff]
      %v281 = vld [vmem:[%s1 + $0x58] sm:$0xff]
      %v282 = vld [vmem:[%s1 + $0x60] sm:$0xff]
      %v283 = vld [vmem:[%s1 + $0x68] sm:$0xff]
      %v284 = vld [vmem:[%s1 + $0x70] sm:$0xff]
      %v285 = vld [vmem:[%s1 + $0x78] sm:$0xff]
      %v286 = vld [vmem:[%s1 + $0x80] sm:$0xff]
      %v287 = vld [vmem:[%s1 + $0x88] sm:$0xff]
      %v288 = vld [vmem:[%s1 + $0x90] sm:$0xff]
      %v289 = vld [vmem:[%s1 + $0x98] sm:$0xff]
      %v290 = vld [vmem:[%s1 + $0xa0] sm:$0xff]
      %v291 = vld [vmem:[%s1 + $0xa8] sm:$0xff]
      %v292 = vld [vmem:[%s1 + $0xb0] sm:$0xff]
      %v293 = vld [vmem:[%s1 + $0xb8] sm:$0xff]
      %v294 = vld [vmem:[%s1 + $0xc0] sm:$0xff]
      %v295 = vld [vmem:[%s1 + $0xc8] sm:$0xff]
      %v296 = vld [vmem:[%s1 + $0xd0] sm:$0xff]
      %v297 = vld [vmem:[%s1 + $0xd8] sm:$0xff]
      %v298 = vld [vmem:[%s1 + $0xe0] sm:$0xff]
      %v299 = vld [vmem:[%s1 + $0xe8] sm:$0xff]
      %v300 = vld [vmem:[%s1 + $0xf0] sm:$0xff]
      %v301 = vld [vmem:[%s1 + $0xf8] sm:$0xff]
      %v302 = vld [vmem:[%s1 + $0x100] sm:$0xff]
      %v303 = vld [vmem:[%s1 + $0x108] sm:$0xff]
      %v304 = vld [vmem:[%s1 + $0x110] sm:$0xff]
      %v305 = vld [vmem:[%s1 + $0x118] sm:$0xff]
      %v306 = vld [vmem:[%s1 + $0x120] sm:$0xff]
      %v307 = vld [vmem:[%s1 + $0x128] sm:$0xff]
      %v308 = vld [vmem:[%s1 + $0x130] sm:$0xff]
      %v309 = vld [vmem:[%s1 + $0x138] sm:$0xff]
      %v310 = vld [vmem:[%s1 + $0x140] sm:$0xff]
      %v311 = vld [vmem:[%s1 + $0x148] sm:$0xff]
      %v312 = vld [vmem:[%s1 + $0x150] sm:$0xff]
      %v313 = vld [vmem:[%s1 + $0x158] sm:$0xff]
      %v314 = vld [vmem:[%s1 + $0x160] sm:$0xff]
      %v315 = vld [vmem:[%s1 + $0x168] sm:$0xff]
      %v316 = vld [vmem:[%s1 + $0x170] sm:$0xff]
      %v317 = vld [vmem:[%s1 + $0x178] sm:$0xff]
      %v318 = vld [vmem:[%s1 + $0x180] sm:$0xff]
      %v319 = vld [vmem:[%s1 + $0x188] sm:$0xff]
      %v320 = vld [vmem:[%s1 + $0x190] sm:$0xff]
      %v321 = vld [vmem:[%s1 + $0x198] sm:$0xff]
      %v322 = vld [vmem:[%s1 + $0x1a0] sm:$0xff]
      %v323 = vld [vmem:[%s1 + $0x1a8] sm:$0xff]
      %v324 = vld [vmem:[%s1 + $0x1b0] sm:$0xff]
      %v325 = vld [vmem:[%s1 + $0x1b8] sm:$0xff]
      %v326 = vld [vmem:[%s1 + $0x1c0] sm:$0xff]
      %v327 = vld [vmem:[%s1 + $0x1c8] sm:$0xff]
      %v328 = vld [vmem:[%s1 + $0x1d0] sm:$0xff]
      %v329 = vld [vmem:[%s1 + $0x1d8] sm:$0xff]
      %v330 = vld [vmem:[%s1 + $0x1e0] sm:$0xff]
      %v331 = vld [vmem:[%s1 + $0x1e8] sm:$0xff]
      %v332 = vld [vmem:[%s1 + $0x1f0] sm:$0xff]
      %v333 = vld [vmem:[%s1 + $0x1f8] sm:$0xff]
      %v334 = vld [vmem:[#allocation2] sm:$0xfe]
      %v335 = vld [vmem:[#allocation2 + $0x8] sm:$0xfe]
      %v336 = vld [vmem:[#allocation2 + $0x20] sm:$0x1]
      %v337 = vld [vmem:[#allocation2 + $0x28] sm:$0x1]
      %s338 = scalar_lea.vmem %s1, 512
      %v339 = vld [vmem:[%s338] sm:$0xff]
      %v340 = vld [vmem:[%s338 + $0x8] sm:$0xff]
      %v341 = vld [vmem:[%s338 + $0x10] sm:$0xff]
      %v342 = vld [vmem:[%s338 + $0x18] sm:$0xff]
      %v343 = vld [vmem:[%s338 + $0x20] sm:$0xff]
      %v344 = vld [vmem:[%s338 + $0x28] sm:$0xff]
      %v345 = vld [vmem:[%s338 + $0x30] sm:$0xff]
      %v346 = vld [vmem:[%s338 + $0x38] sm:$0xff]
      %v347 = vld [vmem:[%s338 + $0x40] sm:$0xff]
      %v348 = vld [vmem:[%s338 + $0x48] sm:$0xff]
      %v349 = vld [vmem:[%s338 + $0x50] sm:$0xff]
      %v350 = vld [vmem:[%s338 + $0x58] sm:$0xff]
      %v351 = vld [vmem:[%s338 + $0x60] sm:$0xff]
      %v352 = vld [vmem:[%s338 + $0x68] sm:$0xff]
      %v353 = vld [vmem:[%s338 + $0x70] sm:$0xff]
      %v354 = vld [vmem:[%s338 + $0x78] sm:$0xff]
      %v355 = vld [vmem:[%s338 + $0x80] sm:$0xff]
      %v356 = vld [vmem:[%s338 + $0x88] sm:$0xff]
      %v357 = vld [vmem:[%s338 + $0x90] sm:$0xff]
      %v358 = vld [vmem:[%s338 + $0x98] sm:$0xff]
      %v359 = vld [vmem:[%s338 + $0xa0] sm:$0xff]
      %v360 = vld [vmem:[%s338 + $0xa8] sm:$0xff]
      %v361 = vld [vmem:[%s338 + $0xb0] sm:$0xff]
      %v362 = vld [vmem:[%s338 + $0xb8] sm:$0xff]
      %v363 = vld [vmem:[%s338 + $0xc0] sm:$0xff]
      %v364 = vld [vmem:[%s338 + $0xc8] sm:$0xff]
      %v365 = vld [vmem:[%s338 + $0xd0] sm:$0xff]
      %v366 = vld [vmem:[%s338 + $0xd8] sm:$0xff]
      %v367 = vld [vmem:[%s338 + $0xe0] sm:$0xff]
      %v368 = vld [vmem:[%s338 + $0xe8] sm:$0xff]
      %v369 = vld [vmem:[%s338 + $0xf0] sm:$0xff]
      %v370 = vld [vmem:[%s338 + $0xf8] sm:$0xff]
      %v371 = vld [vmem:[%s338 + $0x100] sm:$0xff]
      %v372 = vld [vmem:[%s338 + $0x108] sm:$0xff]
      %v373 = vld [vmem:[%s338 + $0x110] sm:$0xff]
      %v374 = vld [vmem:[%s338 + $0x118] sm:$0xff]
      %v375 = vld [vmem:[%s338 + $0x120] sm:$0xff]
      %v376 = vld [vmem:[%s338 + $0x128] sm:$0xff]
      %v377 = vld [vmem:[%s338 + $0x130] sm:$0xff]
      %v378 = vld [vmem:[%s338 + $0x138] sm:$0xff]
      %v379 = vld [vmem:[%s338 + $0x140] sm:$0xff]
      %v380 = vld [vmem:[%s338 + $0x148] sm:$0xff]
      %v381 = vld [vmem:[%s338 + $0x150] sm:$0xff]
      %v382 = vld [vmem:[%s338 + $0x158] sm:$0xff]
      %v383 = vld [vmem:[%s338 + $0x160] sm:$0xff]
      %v384 = vld [vmem:[%s338 + $0x168] sm:$0xff]
      %v385 = vld [vmem:[%s338 + $0x170] sm:$0xff]
      %v386 = vld [vmem:[%s338 + $0x178] sm:$0xff]
      %v387 = vld [vmem:[%s338 + $0x180] sm:$0xff]
      %v388 = vld [vmem:[%s338 + $0x188] sm:$0xff]
      %v389 = vld [vmem:[%s338 + $0x190] sm:$0xff]
      %v390 = vld [vmem:[%s338 + $0x198] sm:$0xff]
      %v391 = vld [vmem:[%s338 + $0x1a0] sm:$0xff]
      %v392 = vld [vmem:[%s338 + $0x1a8] sm:$0xff]
      %v393 = vld [vmem:[%s338 + $0x1b0] sm:$0xff]
      %v394 = vld [vmem:[%s338 + $0x1b8] sm:$0xff]
      %v395 = vld [vmem:[%s338 + $0x1c0] sm:$0xff]
      %v396 = vld [vmem:[%s338 + $0x1c8] sm:$0xff]
      %v397 = vld [vmem:[%s338 + $0x1d0] sm:$0xff]
      %v398 = vld [vmem:[%s338 + $0x1d8] sm:$0xff]
      %v399 = vld [vmem:[%s338 + $0x1e0] sm:$0xff]
      %v400 = vld [vmem:[%s338 + $0x1e8] sm:$0xff]
      %v401 = vld [vmem:[%s338 + $0x1f0] sm:$0xff]
      %v402 = vld [vmem:[%s338 + $0x1f8] sm:$0xff]
      %vm409 = vcmask 1046528
      %v410 = vrot.slane %v334, 1
      %v411 = vrot.slane %v268, 1
      %v412 = vsel %vm409, %v410, %v411
      %v413 = vrot.slane %v335, 1
      %v414 = vrot.slane %v269, 1
      %v415 = vsel %vm409, %v413, %v414
      %v416 = vrot.slane %v336, 1
      %v417 = vsel %vm409, %v411, %v416
      %v418 = vrot.slane %v337, 1
      %v419 = vsel %vm409, %v414, %v418
      %424 = vmatprep.subr.mxu0 %v370
      %425 = vmatpush1.msra.mxu0 %v369
      %426 = vmatprep.subr.mxu0 %v368
      %427 = vmatpush1.msra.mxu0 %v367
      %428 = vmatprep.subr.mxu0 %v366
      %429 = vmatpush1.msra.mxu0 %v365
      %430 = vmatprep.subr.mxu0 %v364
      %431 = vmatpush1.msra.mxu0 %v363
      %432 = vmatprep.subr.mxu0 %v362
      %433 = vmatpush1.msra.mxu0 %v361
      %434 = vmatprep.subr.mxu0 %v360
      %435 = vmatpush1.msra.mxu0 %v359
      %436 = vmatprep.subr.mxu0 %v358
      %437 = vmatpush1.msra.mxu0 %v357
      %438 = vmatprep.subr.mxu0 %v356
      %439 = vmatpush1.msra.mxu0 %v355
      %440 = vmatprep.subr.mxu0 %v354
      %441 = vmatpush1.msra.mxu0 %v353
      %442 = vmatprep.subr.mxu0 %v352
      %443 = vmatpush1.msra.mxu0 %v351
      %444 = vmatprep.subr.mxu0 %v350
      %445 = vmatpush1.msra.mxu0 %v349
      %446 = vmatprep.subr.mxu0 %v348
      %447 = vmatpush1.msra.mxu0 %v347
      %448 = vmatprep.subr.mxu0 %v346
      %449 = vmatpush1.msra.mxu0 %v345
      %450 = vmatprep.subr.mxu0 %v344
      %451 = vmatpush1.msra.mxu0 %v343
      %452 = vmatprep.subr.mxu0 %v342
      %453 = vmatpush1.msra.mxu0 %v341
      %454 = vmatprep.subr.mxu0 %v340
      %455 = vmatpush1.msra.mxu0 %v339
      %456 = vmatprep.subr.mxu0 %v402
      %457 = vmatpush2.msra.mxu0 %v401
      %458 = vmatprep.subr.mxu0 %v400
      %459 = vmatpush2.msra.mxu0 %v399
      %460 = vmatprep.subr.mxu0 %v398
      %461 = vmatpush2.msra.mxu0 %v397
      %462 = vmatprep.subr.mxu0 %v396
      %463 = vmatpush2.msra.mxu0 %v395
      %464 = vmatprep.subr.mxu0 %v394
      %465 = vmatpush2.msra.mxu0 %v393
      %466 = vmatprep.subr.mxu0 %v392
      %467 = vmatpush2.msra.mxu0 %v391
      %468 = vmatprep.subr.mxu0 %v390
      %469 = vmatpush2.msra.mxu0 %v389
      %470 = vmatprep.subr.mxu0 %v388
      %471 = vmatpush2.msra.mxu0 %v387
      %472 = vmatprep.subr.mxu0 %v386
      %473 = vmatpush2.msra.mxu0 %v385
      %474 = vmatprep.subr.mxu0 %v384
      %475 = vmatpush2.msra.mxu0 %v383
      %476 = vmatprep.subr.mxu0 %v382
      %477 = vmatpush2.msra.mxu0 %v381
      %478 = vmatprep.subr.mxu0 %v380
      %479 = vmatpush2.msra.mxu0 %v379
      %480 = vmatprep.subr.mxu0 %v378
      %481 = vmatpush2.msra.mxu0 %v377
      %482 = vmatprep.subr.mxu0 %v376
      %483 = vmatpush2.msra.mxu0 %v375
      %484 = vmatprep.subr.mxu0 %v374
      %485 = vmatpush2.msra.mxu0 %v373
      %486 = vmatprep.subr.mxu0 %v372
      %487 = vmatpush2.msra.mxu0 %v371
      %488 = vmatprep.mubr.f32.mxu0 %v415
      %489 = vmatmul.mubr.f32.gmra.mxu0 %v412
      %v490 = vpop.f32.mrf.mxu0
      %v491 = vadd.f32 0.0, %v490
      %v492 = vpop.f32.mrf.mxu0
      %v493 = vadd.f32 0.0, %v492
      %494 = vmatprep.mubr.f32.mxu0 %v419
      %495 = vmatmul.mubr.f32.gmra.mxu0 %v417
      %v496 = vpop.f32.mrf.mxu0
      %v497 = vadd.f32 0.0, %v496
      %v498 = vpop.f32.mrf.mxu0
      %v499 = vadd.f32 0.0, %v498
      %500 = vdwg.mxu0
      %501 = vmatprep.subr.mxu0 %v301
      %502 = vmatpush1.msra.mxu0 %v300
      %503 = vmatprep.subr.mxu0 %v299
      %504 = vmatpush1.msra.mxu0 %v298
      %505 = vmatprep.subr.mxu0 %v297
      %506 = vmatpush1.msra.mxu0 %v296
      %507 = vmatprep.subr.mxu0 %v295
      %508 = vmatpush1.msra.mxu0 %v294
      %509 = vmatprep.subr.mxu0 %v293
      %510 = vmatpush1.msra.mxu0 %v292
      %511 = vmatprep.subr.mxu0 %v291
      %512 = vmatpush1.msra.mxu0 %v290
      %513 = vmatprep.subr.mxu0 %v289
      %514 = vmatpush1.msra.mxu0 %v288
      %515 = vmatprep.subr.mxu0 %v287
      %516 = vmatpush1.msra.mxu0 %v286
      %517 = vmatprep.subr.mxu0 %v285
      %518 = vmatpush1.msra.mxu0 %v284
      %519 = vmatprep.subr.mxu0 %v283
      %520 = vmatpush1.msra.mxu0 %v282
      %521 = vmatprep.subr.mxu0 %v281
      %522 = vmatpush1.msra.mxu0 %v280
      %523 = vmatprep.subr.mxu0 %v279
      %524 = vmatpush1.msra.mxu0 %v278
      %525 = vmatprep.subr.mxu0 %v277
      %526 = vmatpush1.msra.mxu0 %v276
      %527 = vmatprep.subr.mxu0 %v275
      %528 = vmatpush1.msra.mxu0 %v274
      %529 = vmatprep.subr.mxu0 %v273
      %530 = vmatpush1.msra.mxu0 %v272
      %531 = vmatprep.subr.mxu0 %v271
      %532 = vmatpush1.msra.mxu0 %v270
      %533 = vmatprep.subr.mxu0 %v333
      %534 = vmatpush2.msra.mxu0 %v332
      %535 = vmatprep.subr.mxu0 %v331
      %536 = vmatpush2.msra.mxu0 %v330
      %537 = vmatprep.subr.mxu0 %v329
      %538 = vmatpush2.msra.mxu0 %v328
      %539 = vmatprep.subr.mxu0 %v327
      %540 = vmatpush2.msra.mxu0 %v326
      %541 = vmatprep.subr.mxu0 %v325
      %542 = vmatpush2.msra.mxu0 %v324
      %543 = vmatprep.subr.mxu0 %v323
      %544 = vmatpush2.msra.mxu0 %v322
      %545 = vmatprep.subr.mxu0 %v321
      %546 = vmatpush2.msra.mxu0 %v320
      %547 = vmatprep.subr.mxu0 %v319
      %548 = vmatpush2.msra.mxu0 %v318
      %549 = vmatprep.subr.mxu0 %v317
      %550 = vmatpush2.msra.mxu0 %v316
      %551 = vmatprep.subr.mxu0 %v315
      %552 = vmatpush2.msra.mxu0 %v314
      %553 = vmatprep.subr.mxu0 %v313
      %554 = vmatpush2.msra.mxu0 %v312
      %555 = vmatprep.subr.mxu0 %v311
      %556 = vmatpush2.msra.mxu0 %v310
      %557 = vmatprep.subr.mxu0 %v309
      %558 = vmatpush2.msra.mxu0 %v308
      %559 = vmatprep.subr.mxu0 %v307
      %560 = vmatpush2.msra.mxu0 %v306
      %561 = vmatprep.subr.mxu0 %v305
      %562 = vmatpush2.msra.mxu0 %v304
      %563 = vmatprep.subr.mxu0 %v303
      %564 = vmatpush2.msra.mxu0 %v302
      %565 = vmatprep.mubr.f32.mxu0 %v267
      %566 = vmatmul.mubr.f32.gmra.mxu0 %v266
      %v567 = vpop.f32.mrf.mxu0
      %v568 = vadd.f32 %v491, %v567
      %v569 = vpop.f32.mrf.mxu0
      %v570 = vadd.f32 %v493, %v569
      %571 = vmatprep.mubr.f32.mxu0 %v269
      %572 = vmatmul.mubr.f32.gmra.mxu0 %v268
      %v573 = vpop.f32.mrf.mxu0
      %v574 = vadd.f32 %v497, %v573
      %v575 = vpop.f32.mrf.mxu0
      %v576 = vadd.f32 %v499, %v575
      %577 = vdwg.mxu0
      %v578 = vld [vmem:[#allocation2] sm:$0xfc]
      %v579 = vld [vmem:[#allocation2 + $0x8] sm:$0xfc]
      %v580 = vld [vmem:[#allocation2 + $0x20] sm:$0x3]
      %v581 = vld [vmem:[#allocation2 + $0x28] sm:$0x3]
      %s582 = scalar_lea.vmem %s1, 1024
      %v583 = vld [vmem:[%s582] sm:$0xff]
      %v584 = vld [vmem:[%s582 + $0x8] sm:$0xff]
      %v585 = vld [vmem:[%s582 + $0x10] sm:$0xff]
      %v586 = vld [vmem:[%s582 + $0x18] sm:$0xff]
      %v587 = vld [vmem:[%s582 + $0x20] sm:$0xff]
      %v588 = vld [vmem:[%s582 + $0x28] sm:$0xff]
      %v589 = vld [vmem:[%s582 + $0x30] sm:$0xff]
      %v590 = vld [vmem:[%s582 + $0x38] sm:$0xff]
      %v591 = vld [vmem:[%s582 + $0x40] sm:$0xff]
      %v592 = vld [vmem:[%s582 + $0x48] sm:$0xff]
      %v593 = vld [vmem:[%s582 + $0x50] sm:$0xff]
      %v594 = vld [vmem:[%s582 + $0x58] sm:$0xff]
      %v595 = vld [vmem:[%s582 + $0x60] sm:$0xff]
      %v596 = vld [vmem:[%s582 + $0x68] sm:$0xff]
      %v597 = vld [vmem:[%s582 + $0x70] sm:$0xff]
      %v598 = vld [vmem:[%s582 + $0x78] sm:$0xff]
      %v599 = vld [vmem:[%s582 + $0x80] sm:$0xff]
      %v600 = vld [vmem:[%s582 + $0x88] sm:$0xff]
      %v601 = vld [vmem:[%s582 + $0x90] sm:$0xff]
      %v602 = vld [vmem:[%s582 + $0x98] sm:$0xff]
      %v603 = vld [vmem:[%s582 + $0xa0] sm:$0xff]
      %v604 = vld [vmem:[%s582 + $0xa8] sm:$0xff]
      %v605 = vld [vmem:[%s582 + $0xb0] sm:$0xff]
      %v606 = vld [vmem:[%s582 + $0xb8] sm:$0xff]
      %v607 = vld [vmem:[%s582 + $0xc0] sm:$0xff]
      %v608 = vld [vmem:[%s582 + $0xc8] sm:$0xff]
      %v609 = vld [vmem:[%s582 + $0xd0] sm:$0xff]
      %v610 = vld [vmem:[%s582 + $0xd8] sm:$0xff]
      %v611 = vld [vmem:[%s582 + $0xe0] sm:$0xff]
      %v612 = vld [vmem:[%s582 + $0xe8] sm:$0xff]
      %v613 = vld [vmem:[%s582 + $0xf0] sm:$0xff]
      %v614 = vld [vmem:[%s582 + $0xf8] sm:$0xff]
      %v615 = vld [vmem:[%s582 + $0x100] sm:$0xff]
      %v616 = vld [vmem:[%s582 + $0x108] sm:$0xff]
      %v617 = vld [vmem:[%s582 + $0x110] sm:$0xff]
      %v618 = vld [vmem:[%s582 + $0x118] sm:$0xff]
      %v619 = vld [vmem:[%s582 + $0x120] sm:$0xff]
      %v620 = vld [vmem:[%s582 + $0x128] sm:$0xff]
      %v621 = vld [vmem:[%s582 + $0x130] sm:$0xff]
      %v622 = vld [vmem:[%s582 + $0x138] sm:$0xff]
      %v623 = vld [vmem:[%s582 + $0x140] sm:$0xff]
      %v624 = vld [vmem:[%s582 + $0x148] sm:$0xff]
      %v625 = vld [vmem:[%s582 + $0x150] sm:$0xff]
      %v626 = vld [vmem:[%s582 + $0x158] sm:$0xff]
      %v627 = vld [vmem:[%s582 + $0x160] sm:$0xff]
      %v628 = vld [vmem:[%s582 + $0x168] sm:$0xff]
      %v629 = vld [vmem:[%s582 + $0x170] sm:$0xff]
      %v630 = vld [vmem:[%s582 + $0x178] sm:$0xff]
      %v631 = vld [vmem:[%s582 + $0x180] sm:$0xff]
      %v632 = vld [vmem:[%s582 + $0x188] sm:$0xff]
      %v633 = vld [vmem:[%s582 + $0x190] sm:$0xff]
      %v634 = vld [vmem:[%s582 + $0x198] sm:$0xff]
      %v635 = vld [vmem:[%s582 + $0x1a0] sm:$0xff]
      %v636 = vld [vmem:[%s582 + $0x1a8] sm:$0xff]
      %v637 = vld [vmem:[%s582 + $0x1b0] sm:$0xff]
      %v638 = vld [vmem:[%s582 + $0x1b8] sm:$0xff]
      %v639 = vld [vmem:[%s582 + $0x1c0] sm:$0xff]
      %v640 = vld [vmem:[%s582 + $0x1c8] sm:$0xff]
      %v641 = vld [vmem:[%s582 + $0x1d0] sm:$0xff]
      %v642 = vld [vmem:[%s582 + $0x1d8] sm:$0xff]
      %v643 = vld [vmem:[%s582 + $0x1e0] sm:$0xff]
      %v644 = vld [vmem:[%s582 + $0x1e8] sm:$0xff]
      %v645 = vld [vmem:[%s582 + $0x1f0] sm:$0xff]
      %v646 = vld [vmem:[%s582 + $0x1f8] sm:$0xff]
      %vm651 = vcmask 1045504
      %v652 = vrot.slane %v578, 2
      %v653 = vrot.slane %v268, 2
      %v654 = vsel %vm651, %v652, %v653
      %v655 = vrot.slane %v579, 2
      %v656 = vrot.slane %v269, 2
      %v657 = vsel %vm651, %v655, %v656
      %v658 = vrot.slane %v580, 2
      %v659 = vsel %vm651, %v653, %v658
      %v660 = vrot.slane %v581, 2
      %v661 = vsel %vm651, %v656, %v660
      %666 = vmatprep.subr.mxu0 %v614
      %667 = vmatpush1.msra.mxu0 %v613
      %668 = vmatprep.subr.mxu0 %v612
      %669 = vmatpush1.msra.mxu0 %v611
      %670 = vmatprep.subr.mxu0 %v610
      %671 = vmatpush1.msra.mxu0 %v609
      %672 = vmatprep.subr.mxu0 %v608
      %673 = vmatpush1.msra.mxu0 %v607
      %674 = vmatprep.subr.mxu0 %v606
      %675 = vmatpush1.msra.mxu0 %v605
      %676 = vmatprep.subr.mxu0 %v604
      %677 = vmatpush1.msra.mxu0 %v603
      %678 = vmatprep.subr.mxu0 %v602
      %679 = vmatpush1.msra.mxu0 %v601
      %680 = vmatprep.subr.mxu0 %v600
      %681 = vmatpush1.msra.mxu0 %v599
      %682 = vmatprep.subr.mxu0 %v598
      %683 = vmatpush1.msra.mxu0 %v597
      %684 = vmatprep.subr.mxu0 %v596
      %685 = vmatpush1.msra.mxu0 %v595
      %686 = vmatprep.subr.mxu0 %v594
      %687 = vmatpush1.msra.mxu0 %v593
      %688 = vmatprep.subr.mxu0 %v592
      %689 = vmatpush1.msra.mxu0 %v591
      %690 = vmatprep.subr.mxu0 %v590
      %691 = vmatpush1.msra.mxu0 %v589
      %692 = vmatprep.subr.mxu0 %v588
      %693 = vmatpush1.msra.mxu0 %v587
      %694 = vmatprep.subr.mxu0 %v586
      %695 = vmatpush1.msra.mxu0 %v585
      %696 = vmatprep.subr.mxu0 %v584
      %697 = vmatpush1.msra.mxu0 %v583
      %698 = vmatprep.subr.mxu0 %v646
      %699 = vmatpush2.msra.mxu0 %v645
      %700 = vmatprep.subr.mxu0 %v644
      %701 = vmatpush2.msra.mxu0 %v643
      %702 = vmatprep.subr.mxu0 %v642
      %703 = vmatpush2.msra.mxu0 %v641
      %704 = vmatprep.subr.mxu0 %v640
      %705 = vmatpush2.msra.mxu0 %v639
      %706 = vmatprep.subr.mxu0 %v638
      %707 = vmatpush2.msra.mxu0 %v637
      %708 = vmatprep.subr.mxu0 %v636
      %709 = vmatpush2.msra.mxu0 %v635
      %710 = vmatprep.subr.mxu0 %v634
      %711 = vmatpush2.msra.mxu0 %v633
      %712 = vmatprep.subr.mxu0 %v632
      %713 = vmatpush2.msra.mxu0 %v631
      %714 = vmatprep.subr.mxu0 %v630
      %715 = vmatpush2.msra.mxu0 %v629
      %716 = vmatprep.subr.mxu0 %v628
      %717 = vmatpush2.msra.mxu0 %v627
      %718 = vmatprep.subr.mxu0 %v626
      %719 = vmatpush2.msra.mxu0 %v625
      %720 = vmatprep.subr.mxu0 %v624
      %721 = vmatpush2.msra.mxu0 %v623
      %722 = vmatprep.subr.mxu0 %v622
      %723 = vmatpush2.msra.mxu0 %v621
      %724 = vmatprep.subr.mxu0 %v620
      %725 = vmatpush2.msra.mxu0 %v619
      %726 = vmatprep.subr.mxu0 %v618
      %727 = vmatpush2.msra.mxu0 %v617
      %728 = vmatprep.subr.mxu0 %v616
      %729 = vmatpush2.msra.mxu0 %v615
      %730 = vmatprep.mubr.f32.mxu0 %v657
      %731 = vmatmul.mubr.f32.gmra.mxu0 %v654
      %v732 = vpop.f32.mrf.mxu0
      %v733 = vadd.f32 0.0, %v732
      %v734 = vpop.f32.mrf.mxu0
      %v735 = vadd.f32 0.0, %v734
      %736 = vmatprep.mubr.f32.mxu0 %v661
      %737 = vmatmul.mubr.f32.gmra.mxu0 %v659
      %v738 = vpop.f32.mrf.mxu0
      %v739 = vadd.f32 0.0, %v738
      %v740 = vpop.f32.mrf.mxu0
      %v741 = vadd.f32 0.0, %v740
      %742 = vdwg.mxu0
      %v743 = vadd.f32 %v568, %v733
      %v744 = vadd.f32 %v570, %v735
      %v745 = vadd.f32 %v574, %v739
      %v746 = vadd.f32 %v576, %v741
      %v748 = vlaneseq
      %v749 = vshrl.u32 %v748, 7
      %v750 = vsub.s32 0, %v749
      %v751 = vrot.slane %v265, %v750
      %v752 = vlaneseq
      %v753 = vshrl.u32 %v752, 7
      %v754 = vsub.s32 1, %v753
      %v755 = vrot.slane %v265, %v754
      %v758 = vadd.f32 %v743, %v751
      %v759 = vadd.f32 %v744, %v755
      %v760 = vadd.f32 %v745, %v751
      %v761 = vadd.f32 %v746, %v755
      %v762 = vmax.f32 %v758, 0.0
      %v763 = vmax.f32 %v759, 0.0
      %v764 = vmax.f32 %v760, 0.0
      %v765 = vmax.f32 %v761, 0.0
      %766 = vst.msk [vmem:[#allocation3] ss:$8 sm:$0x3] %vm232, 0.0
      %767 = vst.msk [vmem:[#allocation3] ss:$8 sm:$0x0] %vm232, 0.0
      %s768 = scalar_lea.vmem [#allocation3], 33
      %769 = vst.msk [vmem:[%s768] ss:$8 sm:$0x3] %vm232, 0.0
      %770 = vst.msk [vmem:[%s768] ss:$8 sm:$0x0] %vm232, 0.0
      %v775 = vrot.slane %v762, 7
      %v776 = vrot.slane %v763, 7
      %v777 = vrot.slane %v764, 7
      %v778 = vsel %vm246, %v775, %v777
      %v779 = vrot.slane %v765, 7
      %v780 = vsel %vm246, %v776, %v779
      %787 = vst [vmem:[#allocation3] sm:$0xfe] %v775
      %788 = vst [vmem:[#allocation3 + $0x8] sm:$0xfe] %v776
      %789 = vst [vmem:[#allocation3 + $0x10] sm:$0xff] %v778
      %790 = vst [vmem:[#allocation3 + $0x18] sm:$0xff] %v780
      %791 = vst [vmem:[#allocation3 + $0x20] sm:$0x1] %v777
      %792 = vst [vmem:[#allocation3 + $0x28] sm:$0x1] %v779
      %v793 = vld [vmem:[%s4] sm:$0x3]
      %v794 = vld [vmem:[#allocation3] sm:$0xff]
      %v795 = vld [vmem:[#allocation3 + $0x8] sm:$0xff]
      %v796 = vld [vmem:[#allocation3 + $0x10] sm:$0xff]
      %v797 = vld [vmem:[#allocation3 + $0x18] sm:$0xff]
      %v798 = vld [vmem:[%s3] sm:$0xff]
      %v799 = vld [vmem:[%s3 + $0x8] sm:$0xff]
      %v800 = vld [vmem:[%s3 + $0x10] sm:$0xff]
      %v801 = vld [vmem:[%s3 + $0x18] sm:$0xff]
      %v802 = vld [vmem:[%s3 + $0x20] sm:$0xff]
      %v803 = vld [vmem:[%s3 + $0x28] sm:$0xff]
      %v804 = vld [vmem:[%s3 + $0x30] sm:$0xff]
      %v805 = vld [vmem:[%s3 + $0x38] sm:$0xff]
      %v806 = vld [vmem:[%s3 + $0x40] sm:$0xff]
      %v807 = vld [vmem:[%s3 + $0x48] sm:$0xff]
      %v808 = vld [vmem:[%s3 + $0x50] sm:$0xff]
      %v809 = vld [vmem:[%s3 + $0x58] sm:$0xff]
      %v810 = vld [vmem:[%s3 + $0x60] sm:$0xff]
      %v811 = vld [vmem:[%s3 + $0x68] sm:$0xff]
      %v812 = vld [vmem:[%s3 + $0x70] sm:$0xff]
      %v813 = vld [vmem:[%s3 + $0x78] sm:$0xff]
      %v814 = vld [vmem:[%s3 + $0x80] sm:$0xff]
      %v815 = vld [vmem:[%s3 + $0x88] sm:$0xff]
      %v816 = vld [vmem:[%s3 + $0x90] sm:$0xff]
      %v817 = vld [vmem:[%s3 + $0x98] sm:$0xff]
      %v818 = vld [vmem:[%s3 + $0xa0] sm:$0xff]
      %v819 = vld [vmem:[%s3 + $0xa8] sm:$0xff]
      %v820 = vld [vmem:[%s3 + $0xb0] sm:$0xff]
      %v821 = vld [vmem:[%s3 + $0xb8] sm:$0xff]
      %v822 = vld [vmem:[%s3 + $0xc0] sm:$0xff]
      %v823 = vld [vmem:[%s3 + $0xc8] sm:$0xff]
      %v824 = vld [vmem:[%s3 + $0xd0] sm:$0xff]
      %v825 = vld [vmem:[%s3 + $0xd8] sm:$0xff]
      %v826 = vld [vmem:[%s3 + $0xe0] sm:$0xff]
      %v827 = vld [vmem:[%s3 + $0xe8] sm:$0xff]
      %v828 = vld [vmem:[%s3 + $0xf0] sm:$0xff]
      %v829 = vld [vmem:[%s3 + $0xf8] sm:$0xff]
      %v830 = vld [vmem:[%s3 + $0x100] sm:$0xff]
      %v831 = vld [vmem:[%s3 + $0x108] sm:$0xff]
      %v832 = vld [vmem:[%s3 + $0x110] sm:$0xff]
      %v833 = vld [vmem:[%s3 + $0x118] sm:$0xff]
      %v834 = vld [vmem:[%s3 + $0x120] sm:$0xff]
      %v835 = vld [vmem:[%s3 + $0x128] sm:$0xff]
      %v836 = vld [vmem:[%s3 + $0x130] sm:$0xff]
      %v837 = vld [vmem:[%s3 + $0x138] sm:$0xff]
      %v838 = vld [vmem:[%s3 + $0x140] sm:$0xff]
      %v839 = vld [vmem:[%s3 + $0x148] sm:$0xff]
      %v840 = vld [vmem:[%s3 + $0x150] sm:$0xff]
      %v841 = vld [vmem:[%s3 + $0x158] sm:$0xff]
      %v842 = vld [vmem:[%s3 + $0x160] sm:$0xff]
      %v843 = vld [vmem:[%s3 + $0x168] sm:$0xff]
      %v844 = vld [vmem:[%s3 + $0x170] sm:$0xff]
      %v845 = vld [vmem:[%s3 + $0x178] sm:$0xff]
      %v846 = vld [vmem:[%s3 + $0x180] sm:$0xff]
      %v847 = vld [vmem:[%s3 + $0x188] sm:$0xff]
      %v848 = vld [vmem:[%s3 + $0x190] sm:$0xff]
      %v849 = vld [vmem:[%s3 + $0x198] sm:$0xff]
      %v850 = vld [vmem:[%s3 + $0x1a0] sm:$0xff]
      %v851 = vld [vmem:[%s3 + $0x1a8] sm:$0xff]
      %v852 = vld [vmem:[%s3 + $0x1b0] sm:$0xff]
      %v853 = vld [vmem:[%s3 + $0x1b8] sm:$0xff]
      %v854 = vld [vmem:[%s3 + $0x1c0] sm:$0xff]
      %v855 = vld [vmem:[%s3 + $0x1c8] sm:$0xff]
      %v856 = vld [vmem:[%s3 + $0x1d0] sm:$0xff]
      %v857 = vld [vmem:[%s3 + $0x1d8] sm:$0xff]
      %v858 = vld [vmem:[%s3 + $0x1e0] sm:$0xff]
      %v859 = vld [vmem:[%s3 + $0x1e8] sm:$0xff]
      %v860 = vld [vmem:[%s3 + $0x1f0] sm:$0xff]
      %v861 = vld [vmem:[%s3 + $0x1f8] sm:$0xff]
      %v862 = vld [vmem:[#allocation3] sm:$0xfe]
      %v863 = vld [vmem:[#allocation3 + $0x8] sm:$0xfe]
      %v864 = vld [vmem:[#allocation3 + $0x20] sm:$0x1]
      %v865 = vld [vmem:[#allocation3 + $0x28] sm:$0x1]
      %s866 = scalar_lea.vmem %s3, 512
      %v867 = vld [vmem:[%s866] sm:$0xff]
      %v868 = vld [vmem:[%s866 + $0x8] sm:$0xff]
      %v869 = vld [vmem:[%s866 + $0x10] sm:$0xff]
      %v870 = vld [vmem:[%s866 + $0x18] sm:$0xff]
      %v871 = vld [vmem:[%s866 + $0x20] sm:$0xff]
      %v872 = vld [vmem:[%s866 + $0x28] sm:$0xff]
      %v873 = vld [vmem:[%s866 + $0x30] sm:$0xff]
      %v874 = vld [vmem:[%s866 + $0x38] sm:$0xff]
      %v875 = vld [vmem:[%s866 + $0x40] sm:$0xff]
      %v876 = vld [vmem:[%s866 + $0x48] sm:$0xff]
      %v877 = vld [vmem:[%s866 + $0x50] sm:$0xff]
      %v878 = vld [vmem:[%s866 + $0x58] sm:$0xff]
      %v879 = vld [vmem:[%s866 + $0x60] sm:$0xff]
      %v880 = vld [vmem:[%s866 + $0x68] sm:$0xff]
      %v881 = vld [vmem:[%s866 + $0x70] sm:$0xff]
      %v882 = vld [vmem:[%s866 + $0x78] sm:$0xff]
      %v883 = vld [vmem:[%s866 + $0x80] sm:$0xff]
      %v884 = vld [vmem:[%s866 + $0x88] sm:$0xff]
      %v885 = vld [vmem:[%s866 + $0x90] sm:$0xff]
      %v886 = vld [vmem:[%s866 + $0x98] sm:$0xff]
      %v887 = vld [vmem:[%s866 + $0xa0] sm:$0xff]
      %v888 = vld [vmem:[%s866 + $0xa8] sm:$0xff]
      %v889 = vld [vmem:[%s866 + $0xb0] sm:$0xff]
      %v890 = vld [vmem:[%s866 + $0xb8] sm:$0xff]
      %v891 = vld [vmem:[%s866 + $0xc0] sm:$0xff]
      %v892 = vld [vmem:[%s866 + $0xc8] sm:$0xff]
      %v893 = vld [vmem:[%s866 + $0xd0] sm:$0xff]
      %v894 = vld [vmem:[%s866 + $0xd8] sm:$0xff]
      %v895 = vld [vmem:[%s866 + $0xe0] sm:$0xff]
      %v896 = vld [vmem:[%s866 + $0xe8] sm:$0xff]
      %v897 = vld [vmem:[%s866 + $0xf0] sm:$0xff]
      %v898 = vld [vmem:[%s866 + $0xf8] sm:$0xff]
      %v899 = vld [vmem:[%s866 + $0x100] sm:$0xff]
      %v900 = vld [vmem:[%s866 + $0x108] sm:$0xff]
      %v901 = vld [vmem:[%s866 + $0x110] sm:$0xff]
      %v902 = vld [vmem:[%s866 + $0x118] sm:$0xff]
      %v903 = vld [vmem:[%s866 + $0x120] sm:$0xff]
      %v904 = vld [vmem:[%s866 + $0x128] sm:$0xff]
      %v905 = vld [vmem:[%s866 + $0x130] sm:$0xff]
      %v906 = vld [vmem:[%s866 + $0x138] sm:$0xff]
      %v907 = vld [vmem:[%s866 + $0x140] sm:$0xff]
      %v908 = vld [vmem:[%s866 + $0x148] sm:$0xff]
      %v909 = vld [vmem:[%s866 + $0x150] sm:$0xff]
      %v910 = vld [vmem:[%s866 + $0x158] sm:$0xff]
      %v911 = vld [vmem:[%s866 + $0x160] sm:$0xff]
      %v912 = vld [vmem:[%s866 + $0x168] sm:$0xff]
      %v913 = vld [vmem:[%s866 + $0x170] sm:$0xff]
      %v914 = vld [vmem:[%s866 + $0x178] sm:$0xff]
      %v915 = vld [vmem:[%s866 + $0x180] sm:$0xff]
      %v916 = vld [vmem:[%s866 + $0x188] sm:$0xff]
      %v917 = vld [vmem:[%s866 + $0x190] sm:$0xff]
      %v918 = vld [vmem:[%s866 + $0x198] sm:$0xff]
      %v919 = vld [vmem:[%s866 + $0x1a0] sm:$0xff]
      %v920 = vld [vmem:[%s866 + $0x1a8] sm:$0xff]
      %v921 = vld [vmem:[%s866 + $0x1b0] sm:$0xff]
      %v922 = vld [vmem:[%s866 + $0x1b8] sm:$0xff]
      %v923 = vld [vmem:[%s866 + $0x1c0] sm:$0xff]
      %v924 = vld [vmem:[%s866 + $0x1c8] sm:$0xff]
      %v925 = vld [vmem:[%s866 + $0x1d0] sm:$0xff]
      %v926 = vld [vmem:[%s866 + $0x1d8] sm:$0xff]
      %v927 = vld [vmem:[%s866 + $0x1e0] sm:$0xff]
      %v928 = vld [vmem:[%s866 + $0x1e8] sm:$0xff]
      %v929 = vld [vmem:[%s866 + $0x1f0] sm:$0xff]
      %v930 = vld [vmem:[%s866 + $0x1f8] sm:$0xff]
      %v937 = vrot.slane %v862, 1
      %v938 = vrot.slane %v796, 1
      %v939 = vsel %vm409, %v937, %v938
      %v940 = vrot.slane %v863, 1
      %v941 = vrot.slane %v797, 1
      %v942 = vsel %vm409, %v940, %v941
      %v943 = vrot.slane %v864, 1
      %v944 = vsel %vm409, %v938, %v943
      %v945 = vrot.slane %v865, 1
      %v946 = vsel %vm409, %v941, %v945
      %951 = vmatprep.subr.mxu0 %v898
      %952 = vmatpush1.msra.mxu0 %v897
      %953 = vmatprep.subr.mxu0 %v896
      %954 = vmatpush1.msra.mxu0 %v895
      %955 = vmatprep.subr.mxu0 %v894
      %956 = vmatpush1.msra.mxu0 %v893
      %957 = vmatprep.subr.mxu0 %v892
      %958 = vmatpush1.msra.mxu0 %v891
      %959 = vmatprep.subr.mxu0 %v890
      %960 = vmatpush1.msra.mxu0 %v889
      %961 = vmatprep.subr.mxu0 %v888
      %962 = vmatpush1.msra.mxu0 %v887
      %963 = vmatprep.subr.mxu0 %v886
      %964 = vmatpush1.msra.mxu0 %v885
      %965 = vmatprep.subr.mxu0 %v884
      %966 = vmatpush1.msra.mxu0 %v883
      %967 = vmatprep.subr.mxu0 %v882
      %968 = vmatpush1.msra.mxu0 %v881
      %969 = vmatprep.subr.mxu0 %v880
      %970 = vmatpush1.msra.mxu0 %v879
      %971 = vmatprep.subr.mxu0 %v878
      %972 = vmatpush1.msra.mxu0 %v877
      %973 = vmatprep.subr.mxu0 %v876
      %974 = vmatpush1.msra.mxu0 %v875
      %975 = vmatprep.subr.mxu0 %v874
      %976 = vmatpush1.msra.mxu0 %v873
      %977 = vmatprep.subr.mxu0 %v872
      %978 = vmatpush1.msra.mxu0 %v871
      %979 = vmatprep.subr.mxu0 %v870
      %980 = vmatpush1.msra.mxu0 %v869
      %981 = vmatprep.subr.mxu0 %v868
      %982 = vmatpush1.msra.mxu0 %v867
      %983 = vmatprep.subr.mxu0 %v930
      %984 = vmatpush2.msra.mxu0 %v929
      %985 = vmatprep.subr.mxu0 %v928
      %986 = vmatpush2.msra.mxu0 %v927
      %987 = vmatprep.subr.mxu0 %v926
      %988 = vmatpush2.msra.mxu0 %v925
      %989 = vmatprep.subr.mxu0 %v924
      %990 = vmatpush2.msra.mxu0 %v923
      %991 = vmatprep.subr.mxu0 %v922
      %992 = vmatpush2.msra.mxu0 %v921
      %993 = vmatprep.subr.mxu0 %v920
      %994 = vmatpush2.msra.mxu0 %v919
      %995 = vmatprep.subr.mxu0 %v918
      %996 = vmatpush2.msra.mxu0 %v917
      %997 = vmatprep.subr.mxu0 %v916
      %998 = vmatpush2.msra.mxu0 %v915
      %999 = vmatprep.subr.mxu0 %v914
      %1000 = vmatpush2.msra.mxu0 %v913
      %1001 = vmatprep.subr.mxu0 %v912
      %1002 = vmatpush2.msra.mxu0 %v911
      %1003 = vmatprep.subr.mxu0 %v910
      %1004 = vmatpush2.msra.mxu0 %v909
      %1005 = vmatprep.subr.mxu0 %v908
      %1006 = vmatpush2.msra.mxu0 %v907
      %1007 = vmatprep.subr.mxu0 %v906
      %1008 = vmatpush2.msra.mxu0 %v905
      %1009 = vmatprep.subr.mxu0 %v904
      %1010 = vmatpush2.msra.mxu0 %v903
      %1011 = vmatprep.subr.mxu0 %v902
      %1012 = vmatpush2.msra.mxu0 %v901
      %1013 = vmatprep.subr.mxu0 %v900
      %1014 = vmatpush2.msra.mxu0 %v899
      %1015 = vmatprep.mubr.f32.mxu0 %v942
      %1016 = vmatmul.mubr.f32.gmra.mxu0 %v939
      %v1017 = vpop.f32.mrf.mxu0
      %v1018 = vadd.f32 0.0, %v1017
      %v1019 = vpop.f32.mrf.mxu0
      %v1020 = vadd.f32 0.0, %v1019
      %1021 = vmatprep.mubr.f32.mxu0 %v946
      %1022 = vmatmul.mubr.f32.gmra.mxu0 %v944
      %v1023 = vpop.f32.mrf.mxu0
      %v1024 = vadd.f32 0.0, %v1023
      %v1025 = vpop.f32.mrf.mxu0
      %v1026 = vadd.f32 0.0, %v1025
      %1027 = vdwg.mxu0
      %1028 = vmatprep.subr.mxu0 %v829
      %1029 = vmatpush1.msra.mxu0 %v828
      %1030 = vmatprep.subr.mxu0 %v827
      %1031 = vmatpush1.msra.mxu0 %v826
      %1032 = vmatprep.subr.mxu0 %v825
      %1033 = vmatpush1.msra.mxu0 %v824
      %1034 = vmatprep.subr.mxu0 %v823
      %1035 = vmatpush1.msra.mxu0 %v822
      %1036 = vmatprep.subr.mxu0 %v821
      %1037 = vmatpush1.msra.mxu0 %v820
      %1038 = vmatprep.subr.mxu0 %v819
      %1039 = vmatpush1.msra.mxu0 %v818
      %1040 = vmatprep.subr.mxu0 %v817
      %1041 = vmatpush1.msra.mxu0 %v816
      %1042 = vmatprep.subr.mxu0 %v815
      %1043 = vmatpush1.msra.mxu0 %v814
      %1044 = vmatprep.subr.mxu0 %v813
      %1045 = vmatpush1.msra.mxu0 %v812
      %1046 = vmatprep.subr.mxu0 %v811
      %1047 = vmatpush1.msra.mxu0 %v810
      %1048 = vmatprep.subr.mxu0 %v809
      %1049 = vmatpush1.msra.mxu0 %v808
      %1050 = vmatprep.subr.mxu0 %v807
      %1051 = vmatpush1.msra.mxu0 %v806
      %1052 = vmatprep.subr.mxu0 %v805
      %1053 = vmatpush1.msra.mxu0 %v804
      %1054 = vmatprep.subr.mxu0 %v803
      %1055 = vmatpush1.msra.mxu0 %v802
      %1056 = vmatprep.subr.mxu0 %v801
      %1057 = vmatpush1.msra.mxu0 %v800
      %1058 = vmatprep.subr.mxu0 %v799
      %1059 = vmatpush1.msra.mxu0 %v798
      %1060 = vmatprep.subr.mxu0 %v861
      %1061 = vmatpush2.msra.mxu0 %v860
      %1062 = vmatprep.subr.mxu0 %v859
      %1063 = vmatpush2.msra.mxu0 %v858
      %1064 = vmatprep.subr.mxu0 %v857
      %1065 = vmatpush2.msra.mxu0 %v856
      %1066 = vmatprep.subr.mxu0 %v855
      %1067 = vmatpush2.msra.mxu0 %v854
      %1068 = vmatprep.subr.mxu0 %v853
      %1069 = vmatpush2.msra.mxu0 %v852
      %1070 = vmatprep.subr.mxu0 %v851
      %1071 = vmatpush2.msra.mxu0 %v850
      %1072 = vmatprep.subr.mxu0 %v849
      %1073 = vmatpush2.msra.mxu0 %v848
      %1074 = vmatprep.subr.mxu0 %v847
      %1075 = vmatpush2.msra.mxu0 %v846
      %1076 = vmatprep.subr.mxu0 %v845
      %1077 = vmatpush2.msra.mxu0 %v844
      %1078 = vmatprep.subr.mxu0 %v843
      %1079 = vmatpush2.msra.mxu0 %v842
      %1080 = vmatprep.subr.mxu0 %v841
      %1081 = vmatpush2.msra.mxu0 %v840
      %1082 = vmatprep.subr.mxu0 %v839
      %1083 = vmatpush2.msra.mxu0 %v838
      %1084 = vmatprep.subr.mxu0 %v837
      %1085 = vmatpush2.msra.mxu0 %v836
      %1086 = vmatprep.subr.mxu0 %v835
      %1087 = vmatpush2.msra.mxu0 %v834
      %1088 = vmatprep.subr.mxu0 %v833
      %1089 = vmatpush2.msra.mxu0 %v832
      %1090 = vmatprep.subr.mxu0 %v831
      %1091 = vmatpush2.msra.mxu0 %v830
      %1092 = vmatprep.mubr.f32.mxu0 %v795
      %1093 = vmatmul.mubr.f32.gmra.mxu0 %v794
      %v1094 = vpop.f32.mrf.mxu0
      %v1095 = vadd.f32 %v1018, %v1094
      %v1096 = vpop.f32.mrf.mxu0
      %v1097 = vadd.f32 %v1020, %v1096
      %1098 = vmatprep.mubr.f32.mxu0 %v797
      %1099 = vmatmul.mubr.f32.gmra.mxu0 %v796
      %v1100 = vpop.f32.mrf.mxu0
      %v1101 = vadd.f32 %v1024, %v1100
      %v1102 = vpop.f32.mrf.mxu0
      %v1103 = vadd.f32 %v1026, %v1102
      %1104 = vdwg.mxu0
      %v1105 = vld [vmem:[#allocation3] sm:$0xfc]
      %v1106 = vld [vmem:[#allocation3 + $0x8] sm:$0xfc]
      %v1107 = vld [vmem:[#allocation3 + $0x20] sm:$0x3]
      %v1108 = vld [vmem:[#allocation3 + $0x28] sm:$0x3]
      %s1109 = scalar_lea.vmem %s3, 1024
      %v1110 = vld [vmem:[%s1109] sm:$0xff]
      %v1111 = vld [vmem:[%s1109 + $0x8] sm:$0xff]
      %v1112 = vld [vmem:[%s1109 + $0x10] sm:$0xff]
      %v1113 = vld [vmem:[%s1109 + $0x18] sm:$0xff]
      %v1114 = vld [vmem:[%s1109 + $0x20] sm:$0xff]
      %v1115 = vld [vmem:[%s1109 + $0x28] sm:$0xff]
      %v1116 = vld [vmem:[%s1109 + $0x30] sm:$0xff]
      %v1117 = vld [vmem:[%s1109 + $0x38] sm:$0xff]
      %v1118 = vld [vmem:[%s1109 + $0x40] sm:$0xff]
      %v1119 = vld [vmem:[%s1109 + $0x48] sm:$0xff]
      %v1120 = vld [vmem:[%s1109 + $0x50] sm:$0xff]
      %v1121 = vld [vmem:[%s1109 + $0x58] sm:$0xff]
      %v1122 = vld [vmem:[%s1109 + $0x60] sm:$0xff]
      %v1123 = vld [vmem:[%s1109 + $0x68] sm:$0xff]
      %v1124 = vld [vmem:[%s1109 + $0x70] sm:$0xff]
      %v1125 = vld [vmem:[%s1109 + $0x78] sm:$0xff]
      %v1126 = vld [vmem:[%s1109 + $0x80] sm:$0xff]
      %v1127 = vld [vmem:[%s1109 + $0x88] sm:$0xff]
      %v1128 = vld [vmem:[%s1109 + $0x90] sm:$0xff]
      %v1129 = vld [vmem:[%s1109 + $0x98] sm:$0xff]
      %v1130 = vld [vmem:[%s1109 + $0xa0] sm:$0xff]
      %v1131 = vld [vmem:[%s1109 + $0xa8] sm:$0xff]
      %v1132 = vld [vmem:[%s1109 + $0xb0] sm:$0xff]
      %v1133 = vld [vmem:[%s1109 + $0xb8] sm:$0xff]
      %v1134 = vld [vmem:[%s1109 + $0xc0] sm:$0xff]
      %v1135 = vld [vmem:[%s1109 + $0xc8] sm:$0xff]
      %v1136 = vld [vmem:[%s1109 + $0xd0] sm:$0xff]
      %v1137 = vld [vmem:[%s1109 + $0xd8] sm:$0xff]
      %v1138 = vld [vmem:[%s1109 + $0xe0] sm:$0xff]
      %v1139 = vld [vmem:[%s1109 + $0xe8] sm:$0xff]
      %v1140 = vld [vmem:[%s1109 + $0xf0] sm:$0xff]
      %v1141 = vld [vmem:[%s1109 + $0xf8] sm:$0xff]
      %v1142 = vld [vmem:[%s1109 + $0x100] sm:$0xff]
      %v1143 = vld [vmem:[%s1109 + $0x108] sm:$0xff]
      %v1144 = vld [vmem:[%s1109 + $0x110] sm:$0xff]
      %v1145 = vld [vmem:[%s1109 + $0x118] sm:$0xff]
      %v1146 = vld [vmem:[%s1109 + $0x120] sm:$0xff]
      %v1147 = vld [vmem:[%s1109 + $0x128] sm:$0xff]
      %v1148 = vld [vmem:[%s1109 + $0x130] sm:$0xff]
      %v1149 = vld [vmem:[%s1109 + $0x138] sm:$0xff]
      %v1150 = vld [vmem:[%s1109 + $0x140] sm:$0xff]
      %v1151 = vld [vmem:[%s1109 + $0x148] sm:$0xff]
      %v1152 = vld [vmem:[%s1109 + $0x150] sm:$0xff]
      %v1153 = vld [vmem:[%s1109 + $0x158] sm:$0xff]
      %v1154 = vld [vmem:[%s1109 + $0x160] sm:$0xff]
      %v1155 = vld [vmem:[%s1109 + $0x168] sm:$0xff]
      %v1156 = vld [vmem:[%s1109 + $0x170] sm:$0xff]
      %v1157 = vld [vmem:[%s1109 + $0x178] sm:$0xff]
      %v1158 = vld [vmem:[%s1109 + $0x180] sm:$0xff]
      %v1159 = vld [vmem:[%s1109 + $0x188] sm:$0xff]
      %v1160 = vld [vmem:[%s1109 + $0x190] sm:$0xff]
      %v1161 = vld [vmem:[%s1109 + $0x198] sm:$0xff]
      %v1162 = vld [vmem:[%s1109 + $0x1a0] sm:$0xff]
      %v1163 = vld [vmem:[%s1109 + $0x1a8] sm:$0xff]
      %v1164 = vld [vmem:[%s1109 + $0x1b0] sm:$0xff]
      %v1165 = vld [vmem:[%s1109 + $0x1b8] sm:$0xff]
      %v1166 = vld [vmem:[%s1109 + $0x1c0] sm:$0xff]
      %v1167 = vld [vmem:[%s1109 + $0x1c8] sm:$0xff]
      %v1168 = vld [vmem:[%s1109 + $0x1d0] sm:$0xff]
      %v1169 = vld [vmem:[%s1109 + $0x1d8] sm:$0xff]
      %v1170 = vld [vmem:[%s1109 + $0x1e0] sm:$0xff]
      %v1171 = vld [vmem:[%s1109 + $0x1e8] sm:$0xff]
      %v1172 = vld [vmem:[%s1109 + $0x1f0] sm:$0xff]
      %v1173 = vld [vmem:[%s1109 + $0x1f8] sm:$0xff]
      %v1178 = vrot.slane %v1105, 2
      %v1179 = vrot.slane %v796, 2
      %v1180 = vsel %vm651, %v1178, %v1179
      %v1181 = vrot.slane %v1106, 2
      %v1182 = vrot.slane %v797, 2
      %v1183 = vsel %vm651, %v1181, %v1182
      %v1184 = vrot.slane %v1107, 2
      %v1185 = vsel %vm651, %v1179, %v1184
      %v1186 = vrot.slane %v1108, 2
      %v1187 = vsel %vm651, %v1182, %v1186
      %1192 = vmatprep.subr.mxu0 %v1141
      %1193 = vmatpush1.msra.mxu0 %v1140
      %1194 = vmatprep.subr.mxu0 %v1139
      %1195 = vmatpush1.msra.mxu0 %v1138
      %1196 = vmatprep.subr.mxu0 %v1137
      %1197 = vmatpush1.msra.mxu0 %v1136
      %1198 = vmatprep.subr.mxu0 %v1135
      %1199 = vmatpush1.msra.mxu0 %v1134
      %1200 = vmatprep.subr.mxu0 %v1133
      %1201 = vmatpush1.msra.mxu0 %v1132
      %1202 = vmatprep.subr.mxu0 %v1131
      %1203 = vmatpush1.msra.mxu0 %v1130
      %1204 = vmatprep.subr.mxu0 %v1129
      %1205 = vmatpush1.msra.mxu0 %v1128
      %1206 = vmatprep.subr.mxu0 %v1127
      %1207 = vmatpush1.msra.mxu0 %v1126
      %1208 = vmatprep.subr.mxu0 %v1125
      %1209 = vmatpush1.msra.mxu0 %v1124
      %1210 = vmatprep.subr.mxu0 %v1123
      %1211 = vmatpush1.msra.mxu0 %v1122
      %1212 = vmatprep.subr.mxu0 %v1121
      %1213 = vmatpush1.msra.mxu0 %v1120
      %1214 = vmatprep.subr.mxu0 %v1119
      %1215 = vmatpush1.msra.mxu0 %v1118
      %1216 = vmatprep.subr.mxu0 %v1117
      %1217 = vmatpush1.msra.mxu0 %v1116
      %1218 = vmatprep.subr.mxu0 %v1115
      %1219 = vmatpush1.msra.mxu0 %v1114
      %1220 = vmatprep.subr.mxu0 %v1113
      %1221 = vmatpush1.msra.mxu0 %v1112
      %1222 = vmatprep.subr.mxu0 %v1111
      %1223 = vmatpush1.msra.mxu0 %v1110
      %1224 = vmatprep.subr.mxu0 %v1173
      %1225 = vmatpush2.msra.mxu0 %v1172
      %1226 = vmatprep.subr.mxu0 %v1171
      %1227 = vmatpush2.msra.mxu0 %v1170
      %1228 = vmatprep.subr.mxu0 %v1169
      %1229 = vmatpush2.msra.mxu0 %v1168
      %1230 = vmatprep.subr.mxu0 %v1167
      %1231 = vmatpush2.msra.mxu0 %v1166
      %1232 = vmatprep.subr.mxu0 %v1165
      %1233 = vmatpush2.msra.mxu0 %v1164
      %1234 = vmatprep.subr.mxu0 %v1163
      %1235 = vmatpush2.msra.mxu0 %v1162
      %1236 = vmatprep.subr.mxu0 %v1161
      %1237 = vmatpush2.msra.mxu0 %v1160
      %1238 = vmatprep.subr.mxu0 %v1159
      %1239 = vmatpush2.msra.mxu0 %v1158
      %1240 = vmatprep.subr.mxu0 %v1157
      %1241 = vmatpush2.msra.mxu0 %v1156
      %1242 = vmatprep.subr.mxu0 %v1155
      %1243 = vmatpush2.msra.mxu0 %v1154
      %1244 = vmatprep.subr.mxu0 %v1153
      %1245 = vmatpush2.msra.mxu0 %v1152
      %1246 = vmatprep.subr.mxu0 %v1151
      %1247 = vmatpush2.msra.mxu0 %v1150
      %1248 = vmatprep.subr.mxu0 %v1149
      %1249 = vmatpush2.msra.mxu0 %v1148
      %1250 = vmatprep.subr.mxu0 %v1147
      %1251 = vmatpush2.msra.mxu0 %v1146
      %1252 = vmatprep.subr.mxu0 %v1145
      %1253 = vmatpush2.msra.mxu0 %v1144
      %1254 = vmatprep.subr.mxu0 %v1143
      %1255 = vmatpush2.msra.mxu0 %v1142
      %1256 = vmatprep.mubr.f32.mxu0 %v1183
      %1257 = vmatmul.mubr.f32.gmra.mxu0 %v1180
      %v1258 = vpop.f32.mrf.mxu0
      %v1259 = vadd.f32 0.0, %v1258
      %v1260 = vpop.f32.mrf.mxu0
      %v1261 = vadd.f32 0.0, %v1260
      %1262 = vmatprep.mubr.f32.mxu0 %v1187
      %1263 = vmatmul.mubr.f32.gmra.mxu0 %v1185
      %v1264 = vpop.f32.mrf.mxu0
      %v1265 = vadd.f32 0.0, %v1264
      %v1266 = vpop.f32.mrf.mxu0
      %v1267 = vadd.f32 0.0, %v1266
      %1268 = vdwg.mxu0
      %v1269 = vadd.f32 %v1095, %v1259
      %v1270 = vadd.f32 %v1097, %v1261
      %v1271 = vadd.f32 %v1101, %v1265
      %v1272 = vadd.f32 %v1103, %v1267
      %v1274 = vlaneseq
      %v1275 = vshrl.u32 %v1274, 7
      %v1276 = vsub.s32 0, %v1275
      %v1277 = vrot.slane %v793, %v1276
      %v1278 = vlaneseq
      %v1279 = vshrl.u32 %v1278, 7
      %v1280 = vsub.s32 1, %v1279
      %v1281 = vrot.slane %v793, %v1280
      %v1284 = vadd.f32 %v1269, %v1277
      %v1285 = vadd.f32 %v1270, %v1281
      %v1286 = vadd.f32 %v1271, %v1277
      %v1287 = vadd.f32 %v1272, %v1281
      %v1288 = vmax.f32 %v1284, 0.0
      %v1289 = vmax.f32 %v1285, 0.0
      %v1290 = vmax.f32 %v1286, 0.0
      %v1291 = vmax.f32 %v1287, 0.0
      %v1292 = vadd.f32 %v225, %v1288
      %v1293 = vadd.f32 %v226, %v1289
      %v1294 = vadd.f32 %v227, %v1290
      %v1295 = vadd.f32 %v228, %v1291
      %1296 = vst [vmem:[%s224] sm:$0xff] %v1292
      %1297 = vst [vmem:[%s224 + $0x8] sm:$0xff] %v1293
      %1298 = vst [vmem:[%s224 + $0x10] sm:$0xff] %v1294
      %1299 = vst [vmem:[%s224 + $0x18] sm:$0xff] %v1295
      %p1300 = scmp.lt.s32.totalorder %s16, 1
      %s1301 = scalar_select %p1300, %s16, 1
      %s1302 = smul.addr %s1301, 4
      %s1303 = smul.addr %s1302, 8
      %s1304 = scalar_lea.vmem %s5, %s1303
      // Predicated region
      $region41: #{residual_forward.1} parent=39 // pred_check
        %p1305 = pneg %p144
      $region42: #{residual_forward.1} parent=39 // pred_check_branch
        %1307 = sbr.rel (%p1305) target = $region44
      $region43: #{residual_forward.1} parent=39 // pred_region
        _
      $region44: #{residual_forward.1} parent=39 // pred_fallthru
        _
    $region40: #{residual_forward.1} parent=5 // pred_fallthru
      _
    %p1308 = scmp.le.s32.totalorder 2, %s11
    // Predicated region
    $region45: #{residual_forward.1} parent=5 // pred_check
      %p1309 = pneg %p1308
    $region46: #{residual_forward.1} parent=5 // pred_check_branch
      %1311 = sbr.rel (%p1309) target = $region48
    $region47: #{residual_forward.1} parent=5 // pred_region
      %s1312 = ssub.s32 %s11, 2
      // Predicated region
      $region49: #{residual_forward.1} parent=47 // pred_check
        %p1313 = pneg %p150
      $region50: #{residual_forward.1} parent=47 // pred_check_branch
        %1315 = sbr.rel (%p1313) target = $region52
      $region51: #{residual_forward.1} parent=47 // pred_region
        %p1316 = scmp.lt.s32.totalorder %s17, 1
        %s1317 = scalar_select %p1316, %s17, 1
        %s1318 = smul.addr %s1317, 4
        %s1319 = smul.addr %s1318, 8
        %s1320 = scalar_lea.vmem %s5, %s1319
      $region52: #{residual_forward.1} parent=47 // pred_fallthru
        _
    $region48: #{residual_forward.1} parent=5 // pred_fallthru
      _
  $region6: #{residual_forward.1} parent=0 // loop_footer
    %s15 = sadd.s32 1, %s11
  $region7: #{residual_forward.1} parent=0 // loop_footer_branch
    %10 = sbr.rel target = $region3
  $region8: #{residual_forward.1} parent=0 // loop_exit
    _

</llo_original>
